<compile_context>
chip_gen: v7x
topology: tpu7x:2x2x1
jax: 0.10.0
libtpu: 0.0.40
codegen_flags: <defaults>
</compile_context>

<pallas_src>
import functools
import math

import jax
import jax.numpy as jnp
from jax.experimental import pallas as pl
from jax.experimental.pallas import tpu as pltpu


# ----------------------------------------------------------------------------
# helpers
# ----------------------------------------------------------------------------

def _pick_tile_m(M):
    """Largest row tile in {256,...,8} dividing M; else one full-rows block."""
    for t in (256, 128, 64, 32, 16, 8):
        if M % t == 0:
            return t
    return M  # block == full dim is always a legal BlockSpec


_SQRT2_INV = 1.0 / math.sqrt(2.0)


# ----------------------------------------------------------------------------
# Pallas kernels
# ----------------------------------------------------------------------------

def _dense_kernel(x_ref, w_ref, b_ref, o_ref, *, activation):
    # x: (TM, K) f32, w: (K, N) bf16, b: (1, N) f32 -> o: (TM, N) f32
    x = x_ref[...].astype(jnp.bfloat16)          # cast at the MXU boundary only
    w = w_ref[...].astype(jnp.bfloat16)
    y = jnp.dot(x, w, preferred_element_type=jnp.float32)
    y = y + b_ref[...]
    if activation == "gelu":
        # exact erf-gelu (pytorch-pretrained-bert `gelu`), kept in f32
        y = 0.5 * y * (1.0 + jax.lax.erf(y * _SQRT2_INV))
    o_ref[...] = y.astype(o_ref.dtype)


def dense(x, w, b, activation=None):
    """y = x @ w + b  (w stored (in, out), bf16)."""
    M, K = x.shape
    N = w.shape[1]
    tm = _pick_tile_m(M)
    return pl.pallas_call(
        functools.partial(_dense_kernel, activation=activation),
        out_shape=jax.ShapeDtypeStruct((M, N), jnp.float32),
        grid=(M // tm,),
        in_specs=[
            pl.BlockSpec((tm, K), lambda i: (i, 0)),
            pl.BlockSpec((K, N), lambda i: (0, 0)),   # constant block: fetched once
            pl.BlockSpec((1, N), lambda i: (0, 0)),
        ],
        out_specs=pl.BlockSpec((tm, N), lambda i: (i, 0)),
        compiler_params=pltpu.CompilerParams(dimension_semantics=("parallel",)),
    )(x, w, b)


def _dense_res_ln_kernel(x_ref, w_ref, b_ref, res_ref, g_ref, be_ref, o_ref, *, eps):
    # fused: LayerNorm((x @ w + b) + res) * g + be ; LN math in f32.
    x = x_ref[...].astype(jnp.bfloat16)
    w = w_ref[...].astype(jnp.bfloat16)
    y = jnp.dot(x, w, preferred_element_type=jnp.float32) + b_ref[...]
    h = y + res_ref[...]
    mu = jnp.mean(h, axis=-1, keepdims=True)
    var = jnp.mean((h - mu) * (h - mu), axis=-1, keepdims=True)
    o_ref[...] = ((h - mu) * jax.lax.rsqrt(var + eps)) * g_ref[...] + be_ref[...]


def dense_res_ln(x, w, b, res, gamma, beta, eps=1e-12):
    """LayerNorm(x @ w + b + res) with BertLayerNorm semantics (eps inside rsqrt)."""
    M, K = x.shape
    N = w.shape[1]
    tm = _pick_tile_m(M)
    return pl.pallas_call(
        functools.partial(_dense_res_ln_kernel, eps=eps),
        out_shape=jax.ShapeDtypeStruct((M, N), jnp.float32),
        grid=(M // tm,),
        in_specs=[
            pl.BlockSpec((tm, K), lambda i: (i, 0)),
            pl.BlockSpec((K, N), lambda i: (0, 0)),
            pl.BlockSpec((1, N), lambda i: (0, 0)),
            pl.BlockSpec((tm, N), lambda i: (i, 0)),
            pl.BlockSpec((1, N), lambda i: (0, 0)),
            pl.BlockSpec((1, N), lambda i: (0, 0)),
        ],
        out_specs=pl.BlockSpec((tm, N), lambda i: (i, 0)),
        compiler_params=pltpu.CompilerParams(dimension_semantics=("parallel",)),
    )(x, w, b, res, gamma, beta)


def _ln_kernel(x_ref, g_ref, b_ref, o_ref, *, eps):
    x = x_ref[...]
    mu = jnp.mean(x, axis=-1, keepdims=True)
    var = jnp.mean((x - mu) * (x - mu), axis=-1, keepdims=True)
    o_ref[...] = (x - mu) * jax.lax.rsqrt(var + eps) * g_ref[...] + b_ref[...]


def layernorm(x, gamma, beta, eps=1e-12):
    """LayerNorm(x) over features — used for the embeddings (no residual)."""
    M, H = x.shape
    tm = _pick_tile_m(M)
    return pl.pallas_call(
        functools.partial(_ln_kernel, eps=eps),
        out_shape=jax.ShapeDtypeStruct((M, H), jnp.float32),
        grid=(M // tm,),
        in_specs=[
            pl.BlockSpec((tm, H), lambda i: (i, 0)),
            pl.BlockSpec((1, H), lambda i: (0, 0)),
            pl.BlockSpec((1, H), lambda i: (0, 0)),
        ],
        out_specs=pl.BlockSpec((tm, H), lambda i: (i, 0)),
        compiler_params=pltpu.CompilerParams(dimension_semantics=("parallel",)),
    )(x, gamma, beta)


def _attention_kernel(qkv_ref, mask_ref, o_ref, *, num_heads, head_dim, scale):
    # qkv_ref: (1, S, 3H) f32  (columns: [Q | K | V], each H = num_heads*head_dim)
    # mask_ref: (1, 1, S) additive mask ; o_ref: (1, S, H)
    H = num_heads * head_dim
    m = mask_ref[0]                                   # (1, S), broadcasts over rows
    outs = []
    for h in range(num_heads):                        # static unroll over heads
        c0 = h * head_dim
        q = qkv_ref[0, :, c0:c0 + head_dim].astype(jnp.bfloat16)            # (S,dH)
        k = qkv_ref[0, :, H + c0:H + c0 + head_dim].astype(jnp.bfloat16)    # (S,dH)
        v = qkv_ref[0, :, 2 * H + c0:2 * H + c0 + head_dim].astype(jnp.bfloat16)
        # contract dH directly (no k.T relayout); accumulate in f32
        s = jax.lax.dot_general(q, k, (((1,), (1,)), ((), ())),
                                preferred_element_type=jnp.float32)
        s = s * scale + m                              # (S, S)
        mx = jnp.max(s, axis=-1, keepdims=True)
        p = jnp.exp(s - mx)
        denom = jnp.sum(p, axis=-1, keepdims=True)
        p = p * pl.reciprocal(denom, approx=True)      # divide on the EUP
        ctx = jnp.dot(p.astype(jnp.bfloat16), v,
                      preferred_element_type=jnp.float32)                    # (S,dH)
        outs.append(ctx)
    # single lane-dense (S, H) store for all heads
    o_ref[0] = jnp.concatenate(outs, axis=-1).astype(o_ref.dtype)


def attention(qkv, ext_mask, num_heads):
    """qkv: (B, S, 3H) fused QKV; ext_mask: (B, 1, S) additive -> (B, S, H)."""
    B, S, threeH = qkv.shape
    H = threeH // 3
    dH = H // num_heads
    return pl.pallas_call(
        functools.partial(_attention_kernel, num_heads=num_heads,
                          head_dim=dH, scale=1.0 / math.sqrt(dH)),
        out_shape=jax.ShapeDtypeStruct((B, S, H), jnp.float32),
        grid=(B,),
        in_specs=[
            pl.BlockSpec((1, S, threeH), lambda b: (b, 0, 0)),
            pl.BlockSpec((1, 1, S), lambda b: (b, 0, 0)),
        ],
        out_specs=pl.BlockSpec((1, S, H), lambda b: (b, 0, 0)),
        compiler_params=pltpu.CompilerParams(dimension_semantics=("parallel",)),
    )(qkv, ext_mask)


def _classifier_kernel(x_ref, m_ref, w_ref, b_ref, o_ref):
    # x: (B, n, H) sentence vectors, m: (B, n) mask, w: (1, H), b: (1, 1)
    x = x_ref[...]
    m = m_ref[...]
    w = w_ref[...]
    xm = x * m[:, :, None]                               # sents_vec * mask_cls
    logits = jnp.sum(xm * w[None, :, :], axis=-1) + b_ref[...]   # (B, n)
    scores = 1.0 / (1.0 + jnp.exp(-logits))              # sigmoid
    o_ref[...] = scores * m


def classifier(sents_vec, mask_cls, w, b):
    B, n, _ = sents_vec.shape
    return pl.pallas_call(
        _classifier_kernel,
        out_shape=jax.ShapeDtypeStruct((B, n), jnp.float32),
    )(sents_vec, mask_cls, w, b)


# ----------------------------------------------------------------------------
# Parameter init (deterministic, synthetic — bert_config shapes, no checkpoint)
# ----------------------------------------------------------------------------

def init_params(key, cfg):
    H, I = cfg["hidden"], cfg["intermediate"]
    V, P, L = cfg["vocab"], cfg["max_pos"], cfg["layers"]
    keys = iter(jax.random.split(key, 8 + 4 * L))

    def w32(shape, std=0.02):
        return (std * jax.random.normal(next(keys), shape)).astype(jnp.float32)

    def w16(shape, std=0.02):   # matmul weights live in bf16 (MXU-native, half DMA)
        return (std * jax.random.normal(next(keys), shape)).astype(jnp.bfloat16)

    ones = lambda n: jnp.ones((1, n), jnp.float32)
    zeros = lambda n: jnp.zeros((1, n), jnp.float32)

    params = {
        "word_emb": w32((V, H)),
        "pos_emb": w32((P, H)),
        "type_emb": w32((2, H)),
        "emb_ln_g": ones(H), "emb_ln_b": zeros(H),
        "layers": [],
        # Classifier head (nn.Linear(H, 1) + sigmoid)
        "cls_w": w32((1, H)),
        "cls_b": jnp.zeros((1, 1), jnp.float32),
    }
    for _ in range(L):
        params["layers"].append({
            "qkv_w": w16((H, 3 * H)), "qkv_b": zeros(3 * H),   # fused Q|K|V
            "ao_w": w16((H, H)), "ao_b": zeros(H),
            "ao_ln_g": ones(H), "ao_ln_b": zeros(H),
            "i_w": w16((H, I)), "i_b": zeros(I),
            "o_w": w16((I, H)), "o_b": zeros(H),
            "o_ln_g": ones(H), "o_ln_b": zeros(H),
        })
    return params


# ----------------------------------------------------------------------------
# Forward pass (gathers in JAX glue, hot paths in the Pallas kernels above)
# ----------------------------------------------------------------------------

def bert_forward(params, input_ids, segs, mask, cfg):
    B, S = input_ids.shape
    H, nH = cfg["hidden"], cfg["heads"]

    # Embeddings (table gathers are glue; LayerNorm in Pallas, no zeros residual).
    pos_ids = jnp.arange(S, dtype=jnp.int32)
    emb = (jnp.take(params["word_emb"], input_ids, axis=0)
           + jnp.take(params["pos_emb"], pos_ids, axis=0)[None, :, :]
           + jnp.take(params["type_emb"], segs, axis=0))
    h = layernorm(emb.reshape(B * S, H), params["emb_ln_g"], params["emb_ln_b"])

    # Extended additive attention mask, exactly as pytorch-pretrained-bert.
    ext_mask = ((1.0 - mask.astype(jnp.float32)) * -10000.0)[:, None, :]   # (B,1,S)

    for lp in params["layers"]:
        # --- self attention (fused QKV projection, per-batch attention) ---
        qkv = dense(h, lp["qkv_w"], lp["qkv_b"])                 # (B*S, 3H)
        ctx = attention(qkv.reshape(B, S, 3 * H), ext_mask, nH)  # (B, S, H)
        h = dense_res_ln(ctx.reshape(B * S, H), lp["ao_w"], lp["ao_b"],
                         h, lp["ao_ln_g"], lp["ao_ln_b"])        # proj + add + LN

        # --- feed forward (gelu dense, then proj + add + LN fused) ---
        inter = dense(h, lp["i_w"], lp["i_b"], activation="gelu")
        h = dense_res_ln(inter, lp["o_w"], lp["o_b"],
                         h, lp["o_ln_g"], lp["o_ln_b"])

    return h.reshape(B, S, H)                                    # top_vec


def summarizer_forward(params, input_ids, segs, clss, mask, mask_cls, cfg):
    top_vec = bert_forward(params, input_ids, segs, mask, cfg)          # (B, S, H)
    # sents_vec = top_vec[arange(B)[:,None], clss]   (gather is glue)
    sents_vec = jnp.take_along_axis(top_vec, clss[:, :, None], axis=1)  # (B, n, H)
    sent_scores = classifier(sents_vec, mask_cls.astype(jnp.float32),
                             params["cls_w"], params["cls_b"])          # (B, n)
    return sent_scores, mask_cls


# ----------------------------------------------------------------------------
# Main
# ----------------------------------------------------------------------------

if __name__ == "__main__":
    cfg = dict(hidden=32, heads=4, intermediate=64, layers=2,
               vocab=64, max_pos=16)
    B, S, n_sents = 2, 8, 3

    key = jax.random.PRNGKey(0)
    kp, kx, ks = jax.random.split(key, 3)

    params = init_params(kp, cfg)
    input_ids = jax.random.randint(kx, (B, S), 1, cfg["vocab"], dtype=jnp.int32)
    segs = jax.random.randint(ks, (B, S), 0, 2, dtype=jnp.int32)
    # mask: 1 = real token, 0 = padding (pad last 3 positions of batch 1)
    mask = jnp.ones((B, S), jnp.float32).at[1, -3:].set(0.0)
    # sentence (CLS) positions and their validity mask
    clss = jnp.array([[0, 3, 5], [0, 2, 4]], dtype=jnp.int32)
    mask_cls = jnp.array([[1.0, 1.0, 1.0], [1.0, 1.0, 0.0]], dtype=jnp.float32)

    fwd = jax.jit(functools.partial(summarizer_forward, cfg=cfg))
    sent_scores, out_mask_cls = fwd(params, input_ids, segs, clss, mask, mask_cls)
    jax.block_until_ready(sent_scores)

    assert sent_scores.shape == (B, n_sents)
    assert sent_scores.dtype == jnp.float32
    assert out_mask_cls.shape == (B, n_sents)
    assert bool(jnp.all(jnp.isfinite(sent_scores)))
    print("KERNEL_OK")
</pallas_src>

<mosaic_0001>
module attributes {stable_mosaic.version = 11 : i64} {
  func.func @_ln_kernel(%arg0: i32, %arg1: memref<16x32xf32, #tpu.memory_space<vmem>>, %arg2: memref<1x32xf32, #tpu.memory_space<vmem>>, %arg3: memref<1x32xf32, #tpu.memory_space<vmem>>, %arg4: memref<16x32xf32, #tpu.memory_space<vmem>>) attributes {dimension_semantics = [#tpu.dimension_semantics<parallel>], iteration_bounds = array<i64: 1>, scalar_prefetch = 0 : i64, scratch_operands = 0 : i64, tpu.core_type = #tpu.core_type<tc>, window_params = [{transform_indices = @transform_0, window_bounds = array<i64: 16, 32>}, {pipeline_mode = #tpu.pipeline_mode<synchronous>, transform_indices = @transform_1, window_bounds = array<i64: 1, 32>}, {pipeline_mode = #tpu.pipeline_mode<synchronous>, transform_indices = @transform_2, window_bounds = array<i64: 1, 32>}, {transform_indices = @transform_3, window_bounds = array<i64: 16, 32>}]} {
    %c0 = arith.constant 0 : index
    %c0_0 = arith.constant 0 : index
    %0 = vector.load %arg1[%c0, %c0_0] : memref<16x32xf32, #tpu.memory_space<vmem>>, vector<16x32xf32>
    %cst = arith.constant dense<0.000000e+00> : vector<16xf32>
    %1 = vector.multi_reduction <add>, %0, %cst [1] : vector<16x32xf32> to vector<16xf32>
    %2 = vector.shape_cast %1 : vector<16xf32> to vector<16x1xf32>
    %cst_1 = arith.constant 3.200000e+01 : f32
    %3 = vector.broadcast %cst_1 : f32 to vector<16x1xf32>
    %4 = arith.divf %2, %3 : vector<16x1xf32>
    %5 = vector.broadcast %4 : vector<16x1xf32> to vector<16x32xf32>
    %6 = arith.subf %0, %5 : vector<16x32xf32>
    %7 = vector.broadcast %4 : vector<16x1xf32> to vector<16x32xf32>
    %8 = arith.subf %0, %7 : vector<16x32xf32>
    %9 = arith.mulf %6, %8 : vector<16x32xf32>
    %cst_2 = arith.constant dense<0.000000e+00> : vector<16xf32>
    %10 = vector.multi_reduction <add>, %9, %cst_2 [1] : vector<16x32xf32> to vector<16xf32>
    %11 = vector.shape_cast %10 : vector<16xf32> to vector<16x1xf32>
    %cst_3 = arith.constant 3.200000e+01 : f32
    %12 = vector.broadcast %cst_3 : f32 to vector<16x1xf32>
    %13 = arith.divf %11, %12 : vector<16x1xf32>
    %14 = vector.broadcast %4 : vector<16x1xf32> to vector<16x32xf32>
    %15 = arith.subf %0, %14 : vector<16x32xf32>
    %cst_4 = arith.constant 9.99999996E-13 : f32
    %16 = vector.broadcast %cst_4 : f32 to vector<16x1xf32>
    %17 = arith.addf %13, %16 : vector<16x1xf32>
    %18 = math.rsqrt %17 : vector<16x1xf32>
    %19 = vector.broadcast %18 : vector<16x1xf32> to vector<16x32xf32>
    %20 = arith.mulf %15, %19 : vector<16x32xf32>
    %c0_5 = arith.constant 0 : index
    %c0_6 = arith.constant 0 : index
    %21 = vector.load %arg2[%c0_5, %c0_6] : memref<1x32xf32, #tpu.memory_space<vmem>>, vector<1x32xf32>
    %22 = vector.broadcast %21 : vector<1x32xf32> to vector<16x32xf32>
    %23 = arith.mulf %20, %22 : vector<16x32xf32>
    %c0_7 = arith.constant 0 : index
    %c0_8 = arith.constant 0 : index
    %24 = vector.load %arg3[%c0_7, %c0_8] : memref<1x32xf32, #tpu.memory_space<vmem>>, vector<1x32xf32>
    %25 = vector.broadcast %24 : vector<1x32xf32> to vector<16x32xf32>
    %26 = arith.addf %23, %25 : vector<16x32xf32>
    %c0_9 = arith.constant 0 : index
    %c0_10 = arith.constant 0 : index
    %27 = vector.load %arg4[%c0_9, %c0_10] : memref<16x32xf32, #tpu.memory_space<vmem>>, vector<16x32xf32>
    tpu.vector_store %arg4[%c0_9, %c0_10], %26 {strides = array<i32>} : memref<16x32xf32, #tpu.memory_space<vmem>>, vector<16x32xf32>,
    return
  }
  func.func @transform_0(%arg0: i32) -> (i32, i32) {
    %c0_i32 = arith.constant 0 : i32
    %c0_i32_0 = arith.constant 0 : i32
    return %arg0, %c0_i32 : i32, i32
  }
  func.func @transform_1(%arg0: i32) -> (i32, i32) {
    %c0_i32 = arith.constant 0 : i32
    %c0_i32_0 = arith.constant 0 : i32
    %c0_i32_1 = arith.constant 0 : i32
    return %c0_i32, %c0_i32_0 : i32, i32
  }
  func.func @transform_2(%arg0: i32) -> (i32, i32) {
    %c0_i32 = arith.constant 0 : i32
    %c0_i32_0 = arith.constant 0 : i32
    %c0_i32_1 = arith.constant 0 : i32
    return %c0_i32, %c0_i32_0 : i32, i32
  }
  func.func @transform_3(%arg0: i32) -> (i32, i32) {
    %c0_i32 = arith.constant 0 : i32
    %c0_i32_0 = arith.constant 0 : i32
    return %arg0, %c0_i32 : i32, i32
  }
}

module attributes {stable_mosaic.version = 11 : i64} {
  func.func @_dense_kernel(%arg0: i32, %arg1: memref<16x32xf32, #tpu.memory_space<vmem>>, %arg2: memref<32x96xbf16, #tpu.memory_space<vmem>>, %arg3: memref<1x96xf32, #tpu.memory_space<vmem>>, %arg4: memref<16x96xf32, #tpu.memory_space<vmem>>) attributes {dimension_semantics = [#tpu.dimension_semantics<parallel>], iteration_bounds = array<i64: 1>, scalar_prefetch = 0 : i64, scratch_operands = 0 : i64, tpu.core_type = #tpu.core_type<tc>, window_params = [{transform_indices = @transform_0, window_bounds = array<i64: 16, 32>}, {pipeline_mode = #tpu.pipeline_mode<synchronous>, transform_indices = @transform_1, window_bounds = array<i64: 32, 96>}, {pipeline_mode = #tpu.pipeline_mode<synchronous>, transform_indices = @transform_2, window_bounds = array<i64: 1, 96>}, {transform_indices = @transform_3, window_bounds = array<i64: 16, 96>}]} {
    %c0 = arith.constant 0 : index
    %c0_0 = arith.constant 0 : index
    %0 = vector.load %arg1[%c0, %c0_0] : memref<16x32xf32, #tpu.memory_space<vmem>>, vector<16x32xf32>
    %1 = arith.truncf %0 : vector<16x32xf32> to vector<16x32xbf16>
    %c0_1 = arith.constant 0 : index
    %c0_2 = arith.constant 0 : index
    %2 = vector.load %arg2[%c0_1, %c0_2] : memref<32x96xbf16, #tpu.memory_space<vmem>>, vector<32x96xbf16>
    %cst = arith.constant dense<0.000000e+00> : vector<16x96xf32>
    %3 = tpu.matmul %1, %2, %cst {dimension_numbers = #tpu.dot_dimension_numbers<[1], [0], [0], [1], [0, 0, 1, 1], [], []>} : vector<16x32xbf16>, vector<32x96xbf16>, vector<16x96xf32> -> vector<16x96xf32>
    %c0_3 = arith.constant 0 : index
    %c0_4 = arith.constant 0 : index
    %4 = vector.load %arg3[%c0_3, %c0_4] : memref<1x96xf32, #tpu.memory_space<vmem>>, vector<1x96xf32>
    %5 = vector.broadcast %4 : vector<1x96xf32> to vector<16x96xf32>
    %6 = arith.addf %3, %5 : vector<16x96xf32>
    %c0_5 = arith.constant 0 : index
    %c0_6 = arith.constant 0 : index
    %7 = vector.load %arg4[%c0_5, %c0_6] : memref<16x96xf32, #tpu.memory_space<vmem>>, vector<16x96xf32>
    tpu.vector_store %arg4[%c0_5, %c0_6], %6 {strides = array<i32>} : memref<16x96xf32, #tpu.memory_space<vmem>>, vector<16x96xf32>,
    return
  }
  func.func @transform_0(%arg0: i32) -> (i32, i32) {
    %c0_i32 = arith.constant 0 : i32
    %c0_i32_0 = arith.constant 0 : i32
    return %arg0, %c0_i32 : i32, i32
  }
  func.func @transform_1(%arg0: i32) -> (i32, i32) {
    %c0_i32 = arith.constant 0 : i32
    %c0_i32_0 = arith.constant 0 : i32
    %c0_i32_1 = arith.constant 0 : i32
    return %c0_i32, %c0_i32_0 : i32, i32
  }
  func.func @transform_2(%arg0: i32) -> (i32, i32) {
    %c0_i32 = arith.constant 0 : i32
    %c0_i32_0 = arith.constant 0 : i32
    %c0_i32_1 = arith.constant 0 : i32
    return %c0_i32, %c0_i32_0 : i32, i32
  }
  func.func @transform_3(%arg0: i32) -> (i32, i32) {
    %c0_i32 = arith.constant 0 : i32
    %c0_i32_0 = arith.constant 0 : i32
    return %arg0, %c0_i32 : i32, i32
  }
}

module attributes {stable_mosaic.version = 11 : i64} {
  func.func @_attention_kernel(%arg0: i32, %arg1: memref<1x8x96xf32, #tpu.memory_space<vmem>>, %arg2: memref<1x1x8xf32, #tpu.memory_space<vmem>>, %arg3: memref<1x8x32xf32, #tpu.memory_space<vmem>>) attributes {dimension_semantics = [#tpu.dimension_semantics<parallel>], iteration_bounds = array<i64: 2>, scalar_prefetch = 0 : i64, scratch_operands = 0 : i64, tpu.core_type = #tpu.core_type<tc>, window_params = [{transform_indices = @transform_0, window_bounds = array<i64: 1, 8, 96>}, {transform_indices = @transform_1, window_bounds = array<i64: 1, 1, 8>}, {transform_indices = @transform_2, window_bounds = array<i64: 1, 8, 32>}]} {
    %c0 = arith.constant 0 : index
    %c0_0 = arith.constant 0 : index
    %c0_1 = arith.constant 0 : index
    %0 = vector.load %arg2[%c0, %c0_0, %c0_1] : memref<1x1x8xf32, #tpu.memory_space<vmem>>, vector<1x1x8xf32>
    %1 = vector.shape_cast %0 : vector<1x1x8xf32> to vector<1x8xf32>
    %c0_2 = arith.constant 0 : index
    %c0_3 = arith.constant 0 : index
    %c0_4 = arith.constant 0 : index
    %2 = vector.load %arg1[%c0_2, %c0_3, %c0_4] : memref<1x8x96xf32, #tpu.memory_space<vmem>>, vector<1x8x8xf32>
    %3 = vector.shape_cast %2 : vector<1x8x8xf32> to vector<8x8xf32>
    %4 = arith.truncf %3 : vector<8x8xf32> to vector<8x8xbf16>
    %c0_5 = arith.constant 0 : index
    %c0_6 = arith.constant 0 : index
    %c32 = arith.constant 32 : index
    %5 = vector.load %arg1[%c0_5, %c0_6, %c32] : memref<1x8x96xf32, #tpu.memory_space<vmem>>, vector<1x8x8xf32>
    %6 = vector.shape_cast %5 : vector<1x8x8xf32> to vector<8x8xf32>
    %7 = arith.truncf %6 : vector<8x8xf32> to vector<8x8xbf16>
    %c0_7 = arith.constant 0 : index
    %c0_8 = arith.constant 0 : index
    %c64 = arith.constant 64 : index
    %8 = vector.load %arg1[%c0_7, %c0_8, %c64] : memref<1x8x96xf32, #tpu.memory_space<vmem>>, vector<1x8x8xf32>
    %9 = vector.shape_cast %8 : vector<1x8x8xf32> to vector<8x8xf32>
    %10 = arith.truncf %9 : vector<8x8xf32> to vector<8x8xbf16>
    %cst = arith.constant dense<0.000000e+00> : vector<8x8xf32>
    %11 = tpu.matmul %4, %7, %cst {dimension_numbers = #tpu.dot_dimension_numbers<[1], [1], [0], [0], [0, 0, 1, 0], [], []>} : vector<8x8xbf16>, vector<8x8xbf16>, vector<8x8xf32> -> vector<8x8xf32>
    %cst_9 = arith.constant 0.353553385 : f32
    %12 = vector.broadcast %cst_9 : f32 to vector<8x8xf32>
    %13 = arith.mulf %11, %12 : vector<8x8xf32>
    %14 = vector.broadcast %1 : vector<1x8xf32> to vector<8x8xf32>
    %15 = arith.addf %13, %14 : vector<8x8xf32>
    %cst_10 = arith.constant dense<0xFF800000> : vector<8xf32>
    %16 = vector.multi_reduction <maximumf>, %15, %cst_10 [1] : vector<8x8xf32> to vector<8xf32>
    %17 = vector.shape_cast %16 : vector<8xf32> to vector<8x1xf32>
    %18 = vector.broadcast %17 : vector<8x1xf32> to vector<8x8xf32>
    %19 = arith.subf %15, %18 : vector<8x8xf32>
    %20 = math.exp %19 : vector<8x8xf32>
    %cst_11 = arith.constant dense<0.000000e+00> : vector<8xf32>
    %21 = vector.multi_reduction <add>, %20, %cst_11 [1] : vector<8x8xf32> to vector<8xf32>
    %22 = vector.shape_cast %21 : vector<8xf32> to vector<8x1xf32>
    %23 = tpu.reciprocal %22 {approx = true} : vector<8x1xf32> -> vector<8x1xf32>
    %24 = vector.broadcast %23 : vector<8x1xf32> to vector<8x8xf32>
    %25 = arith.mulf %20, %24 : vector<8x8xf32>
    %26 = arith.truncf %25 : vector<8x8xf32> to vector<8x8xbf16>
    %cst_12 = arith.constant dense<0.000000e+00> : vector<8x8xf32>
    %27 = tpu.matmul %26, %10, %cst_12 {dimension_numbers = #tpu.dot_dimension_numbers<[1], [0], [0], [1], [0, 0, 1, 1], [], []>} : vector<8x8xbf16>, vector<8x8xbf16>, vector<8x8xf32> -> vector<8x8xf32>
    %c0_13 = arith.constant 0 : index
    %c0_14 = arith.constant 0 : index
    %c8 = arith.constant 8 : index
    %28 = vector.load %arg1[%c0_13, %c0_14, %c8] : memref<1x8x96xf32, #tpu.memory_space<vmem>>, vector<1x8x8xf32>
    %29 = vector.shape_cast %28 : vector<1x8x8xf32> to vector<8x8xf32>
    %30 = arith.truncf %29 : vector<8x8xf32> to vector<8x8xbf16>
    %c0_15 = arith.constant 0 : index
    %c0_16 = arith.constant 0 : index
    %c40 = arith.constant 40 : index
    %31 = vector.load %arg1[%c0_15, %c0_16, %c40] : memref<1x8x96xf32, #tpu.memory_space<vmem>>, vector<1x8x8xf32>
    %32 = vector.shape_cast %31 : vector<1x8x8xf32> to vector<8x8xf32>
    %33 = arith.truncf %32 : vector<8x8xf32> to vector<8x8xbf16>
    %c0_17 = arith.constant 0 : index
    %c0_18 = arith.constant 0 : index
    %c72 = arith.constant 72 : index
    %34 = vector.load %arg1[%c0_17, %c0_18, %c72] : memref<1x8x96xf32, #tpu.memory_space<vmem>>, vector<1x8x8xf32>
    %35 = vector.shape_cast %34 : vector<1x8x8xf32> to vector<8x8xf32>
    %36 = arith.truncf %35 : vector<8x8xf32> to vector<8x8xbf16>
    %cst_19 = arith.constant dense<0.000000e+00> : vector<8x8xf32>
    %37 = tpu.matmul %30, %33, %cst_19 {dimension_numbers = #tpu.dot_dimension_numbers<[1], [1], [0], [0], [0, 0, 1, 0], [], []>} : vector<8x8xbf16>, vector<8x8xbf16>, vector<8x8xf32> -> vector<8x8xf32>
    %cst_20 = arith.constant 0.353553385 : f32
    %38 = vector.broadcast %cst_20 : f32 to vector<8x8xf32>
    %39 = arith.mulf %37, %38 : vector<8x8xf32>
    %40 = vector.broadcast %1 : vector<1x8xf32> to vector<8x8xf32>
    %41 = arith.addf %39, %40 : vector<8x8xf32>
    %cst_21 = arith.constant dense<0xFF800000> : vector<8xf32>
    %42 = vector.multi_reduction <maximumf>, %41, %cst_21 [1] : vector<8x8xf32> to vector<8xf32>
    %43 = vector.shape_cast %42 : vector<8xf32> to vector<8x1xf32>
    %44 = vector.broadcast %43 : vector<8x1xf32> to vector<8x8xf32>
    %45 = arith.subf %41, %44 : vector<8x8xf32>
    %46 = math.exp %45 : vector<8x8xf32>
    %cst_22 = arith.constant dense<0.000000e+00> : vector<8xf32>
    %47 = vector.multi_reduction <add>, %46, %cst_22 [1] : vector<8x8xf32> to vector<8xf32>
    %48 = vector.shape_cast %47 : vector<8xf32> to vector<8x1xf32>
    %49 = tpu.reciprocal %48 {approx = true} : vector<8x1xf32> -> vector<8x1xf32>
    %50 = vector.broadcast %49 : vector<8x1xf32> to vector<8x8xf32>
    %51 = arith.mulf %46, %50 : vector<8x8xf32>
    %52 = arith.truncf %51 : vector<8x8xf32> to vector<8x8xbf16>
    %cst_23 = arith.constant dense<0.000000e+00> : vector<8x8xf32>
    %53 = tpu.matmul %52, %36, %cst_23 {dimension_numbers = #tpu.dot_dimension_numbers<[1], [0], [0], [1], [0, 0, 1, 1], [], []>} : vector<8x8xbf16>, vector<8x8xbf16>, vector<8x8xf32> -> vector<8x8xf32>
    %c0_24 = arith.constant 0 : index
    %c0_25 = arith.constant 0 : index
    %c16 = arith.constant 16 : index
    %54 = vector.load %arg1[%c0_24, %c0_25, %c16] : memref<1x8x96xf32, #tpu.memory_space<vmem>>, vector<1x8x8xf32>
    %55 = vector.shape_cast %54 : vector<1x8x8xf32> to vector<8x8xf32>
    %56 = arith.truncf %55 : vector<8x8xf32> to vector<8x8xbf16>
    %c0_26 = arith.constant 0 : index
    %c0_27 = arith.constant 0 : index
    %c48 = arith.constant 48 : index
    %57 = vector.load %arg1[%c0_26, %c0_27, %c48] : memref<1x8x96xf32, #tpu.memory_space<vmem>>, vector<1x8x8xf32>
    %58 = vector.shape_cast %57 : vector<1x8x8xf32> to vector<8x8xf32>
    %59 = arith.truncf %58 : vector<8x8xf32> to vector<8x8xbf16>
    %c0_28 = arith.constant 0 : index
    %c0_29 = arith.constant 0 : index
    %c80 = arith.constant 80 : index
    %60 = vector.load %arg1[%c0_28, %c0_29, %c80] : memref<1x8x96xf32, #tpu.memory_space<vmem>>, vector<1x8x8xf32>
    %61 = vector.shape_cast %60 : vector<1x8x8xf32> to vector<8x8xf32>
    %62 = arith.truncf %61 : vector<8x8xf32> to vector<8x8xbf16>
    %cst_30 = arith.constant dense<0.000000e+00> : vector<8x8xf32>
    %63 = tpu.matmul %56, %59, %cst_30 {dimension_numbers = #tpu.dot_dimension_numbers<[1], [1], [0], [0], [0, 0, 1, 0], [], []>} : vector<8x8xbf16>, vector<8x8xbf16>, vector<8x8xf32> -> vector<8x8xf32>
    %cst_31 = arith.constant 0.353553385 : f32
    %64 = vector.broadcast %cst_31 : f32 to vector<8x8xf32>
    %65 = arith.mulf %63, %64 : vector<8x8xf32>
    %66 = vector.broadcast %1 : vector<1x8xf32> to vector<8x8xf32>
    %67 = arith.addf %65, %66 : vector<8x8xf32>
    %cst_32 = arith.constant dense<0xFF800000> : vector<8xf32>
    %68 = vector.multi_reduction <maximumf>, %67, %cst_32 [1] : vector<8x8xf32> to vector<8xf32>
    %69 = vector.shape_cast %68 : vector<8xf32> to vector<8x1xf32>
    %70 = vector.broadcast %69 : vector<8x1xf32> to vector<8x8xf32>
    %71 = arith.subf %67, %70 : vector<8x8xf32>
    %72 = math.exp %71 : vector<8x8xf32>
    %cst_33 = arith.constant dense<0.000000e+00> : vector<8xf32>
    %73 = vector.multi_reduction <add>, %72, %cst_33 [1] : vector<8x8xf32> to vector<8xf32>
    %74 = vector.shape_cast %73 : vector<8xf32> to vector<8x1xf32>
    %75 = tpu.reciprocal %74 {approx = true} : vector<8x1xf32> -> vector<8x1xf32>
    %76 = vector.broadcast %75 : vector<8x1xf32> to vector<8x8xf32>
    %77 = arith.mulf %72, %76 : vector<8x8xf32>
    %78 = arith.truncf %77 : vector<8x8xf32> to vector<8x8xbf16>
    %cst_34 = arith.constant dense<0.000000e+00> : vector<8x8xf32>
    %79 = tpu.matmul %78, %62, %cst_34 {dimension_numbers = #tpu.dot_dimension_numbers<[1], [0], [0], [1], [0, 0, 1, 1], [], []>} : vector<8x8xbf16>, vector<8x8xbf16>, vector<8x8xf32> -> vector<8x8xf32>
    %c0_35 = arith.constant 0 : index
    %c0_36 = arith.constant 0 : index
    %c24 = arith.constant 24 : index
    %80 = vector.load %arg1[%c0_35, %c0_36, %c24] : memref<1x8x96xf32, #tpu.memory_space<vmem>>, vector<1x8x8xf32>
    %81 = vector.shape_cast %80 : vector<1x8x8xf32> to vector<8x8xf32>
    %82 = arith.truncf %81 : vector<8x8xf32> to vector<8x8xbf16>
    %c0_37 = arith.constant 0 : index
    %c0_38 = arith.constant 0 : index
    %c56 = arith.constant 56 : index
    %83 = vector.load %arg1[%c0_37, %c0_38, %c56] : memref<1x8x96xf32, #tpu.memory_space<vmem>>, vector<1x8x8xf32>
    %84 = vector.shape_cast %83 : vector<1x8x8xf32> to vector<8x8xf32>
    %85 = arith.truncf %84 : vector<8x8xf32> to vector<8x8xbf16>
    %c0_39 = arith.constant 0 : index
    %c0_40 = arith.constant 0 : index
    %c88 = arith.constant 88 : index
    %86 = vector.load %arg1[%c0_39, %c0_40, %c88] : memref<1x8x96xf32, #tpu.memory_space<vmem>>, vector<1x8x8xf32>
    %87 = vector.shape_cast %86 : vector<1x8x8xf32> to vector<8x8xf32>
    %88 = arith.truncf %87 : vector<8x8xf32> to vector<8x8xbf16>
    %cst_41 = arith.constant dense<0.000000e+00> : vector<8x8xf32>
    %89 = tpu.matmul %82, %85, %cst_41 {dimension_numbers = #tpu.dot_dimension_numbers<[1], [1], [0], [0], [0, 0, 1, 0], [], []>} : vector<8x8xbf16>, vector<8x8xbf16>, vector<8x8xf32> -> vector<8x8xf32>
    %cst_42 = arith.constant 0.353553385 : f32
    %90 = vector.broadcast %cst_42 : f32 to vector<8x8xf32>
    %91 = arith.mulf %89, %90 : vector<8x8xf32>
    %92 = vector.broadcast %1 : vector<1x8xf32> to vector<8x8xf32>
    %93 = arith.addf %91, %92 : vector<8x8xf32>
    %cst_43 = arith.constant dense<0xFF800000> : vector<8xf32>
    %94 = vector.multi_reduction <maximumf>, %93, %cst_43 [1] : vector<8x8xf32> to vector<8xf32>
    %95 = vector.shape_cast %94 : vector<8xf32> to vector<8x1xf32>
    %96 = vector.broadcast %95 : vector<8x1xf32> to vector<8x8xf32>
    %97 = arith.subf %93, %96 : vector<8x8xf32>
    %98 = math.exp %97 : vector<8x8xf32>
    %cst_44 = arith.constant dense<0.000000e+00> : vector<8xf32>
    %99 = vector.multi_reduction <add>, %98, %cst_44 [1] : vector<8x8xf32> to vector<8xf32>
    %100 = vector.shape_cast %99 : vector<8xf32> to vector<8x1xf32>
    %101 = tpu.reciprocal %100 {approx = true} : vector<8x1xf32> -> vector<8x1xf32>
    %102 = vector.broadcast %101 : vector<8x1xf32> to vector<8x8xf32>
    %103 = arith.mulf %98, %102 : vector<8x8xf32>
    %104 = arith.truncf %103 : vector<8x8xf32> to vector<8x8xbf16>
    %cst_45 = arith.constant dense<0.000000e+00> : vector<8x8xf32>
    %105 = tpu.matmul %104, %88, %cst_45 {dimension_numbers = #tpu.dot_dimension_numbers<[1], [0], [0], [1], [0, 0, 1, 1], [], []>} : vector<8x8xbf16>, vector<8x8xbf16>, vector<8x8xf32> -> vector<8x8xf32>
    %106 = tpu.concatenate %27, %53, %79, %105 in 1 : vector<8x8xf32>, vector<8x8xf32>, vector<8x8xf32>, vector<8x8xf32> -> vector<8x32xf32>
    %c0_46 = arith.constant 0 : index
    %c0_47 = arith.constant 0 : index
    %c0_48 = arith.constant 0 : index
    %107 = vector.load %arg3[%c0_46, %c0_47, %c0_48] : memref<1x8x32xf32, #tpu.memory_space<vmem>>, vector<1x8x32xf32>
    %108 = vector.shape_cast %107 : vector<1x8x32xf32> to vector<8x32xf32>
    %109 = vector.shape_cast %106 : vector<8x32xf32> to vector<1x8x32xf32>
    tpu.vector_store %arg3[%c0_46, %c0_47, %c0_48], %109 {strides = array<i32>} : memref<1x8x32xf32, #tpu.memory_space<vmem>>, vector<1x8x32xf32>,
    return
  }
  func.func @transform_0(%arg0: i32) -> (i32, i32, i32) {
    %c0_i32 = arith.constant 0 : i32
    %c0_i32_0 = arith.constant 0 : i32
    %c0_i32_1 = arith.constant 0 : i32
    return %arg0, %c0_i32, %c0_i32_0 : i32, i32, i32
  }
  func.func @transform_1(%arg0: i32) -> (i32, i32, i32) {
    %c0_i32 = arith.constant 0 : i32
    %c0_i32_0 = arith.constant 0 : i32
    %c0_i32_1 = arith.constant 0 : i32
    return %arg0, %c0_i32, %c0_i32_0 : i32, i32, i32
  }
  func.func @transform_2(%arg0: i32) -> (i32, i32, i32) {
    %c0_i32 = arith.constant 0 : i32
    %c0_i32_0 = arith.constant 0 : i32
    %c0_i32_1 = arith.constant 0 : i32
    return %arg0, %c0_i32, %c0_i32_0 : i32, i32, i32
  }
}

module attributes {stable_mosaic.version = 11 : i64} {
  func.func @_dense_res_ln_kernel(%arg0: i32, %arg1: memref<16x32xf32, #tpu.memory_space<vmem>>, %arg2: memref<32x32xbf16, #tpu.memory_space<vmem>>, %arg3: memref<1x32xf32, #tpu.memory_space<vmem>>, %arg4: memref<16x32xf32, #tpu.memory_space<vmem>>, %arg5: memref<1x32xf32, #tpu.memory_space<vmem>>, %arg6: memref<1x32xf32, #tpu.memory_space<vmem>>, %arg7: memref<16x32xf32, #tpu.memory_space<vmem>>) attributes {dimension_semantics = [#tpu.dimension_semantics<parallel>], iteration_bounds = array<i64: 1>, scalar_prefetch = 0 : i64, scratch_operands = 0 : i64, tpu.core_type = #tpu.core_type<tc>, window_params = [{transform_indices = @transform_0, window_bounds = array<i64: 16, 32>}, {pipeline_mode = #tpu.pipeline_mode<synchronous>, transform_indices = @transform_1, window_bounds = array<i64: 32, 32>}, {pipeline_mode = #tpu.pipeline_mode<synchronous>, transform_indices = @transform_2, window_bounds = array<i64: 1, 32>}, {transform_indices = @transform_3, window_bounds = array<i64: 16, 32>}, {pipeline_mode = #tpu.pipeline_mode<synchronous>, transform_indices = @transform_4, window_bounds = array<i64: 1, 32>}, {pipeline_mode = #tpu.pipeline_mode<synchronous>, transform_indices = @transform_5, window_bounds = array<i64: 1, 32>}, {transform_indices = @transform_6, window_bounds = array<i64: 16, 32>}]} {
    %c0 = arith.constant 0 : index
    %c0_0 = arith.constant 0 : index
    %0 = vector.load %arg1[%c0, %c0_0] : memref<16x32xf32, #tpu.memory_space<vmem>>, vector<16x32xf32>
    %1 = arith.truncf %0 : vector<16x32xf32> to vector<16x32xbf16>
    %c0_1 = arith.constant 0 : index
    %c0_2 = arith.constant 0 : index
    %2 = vector.load %arg2[%c0_1, %c0_2] : memref<32x32xbf16, #tpu.memory_space<vmem>>, vector<32x32xbf16>
    %cst = arith.constant dense<0.000000e+00> : vector<16x32xf32>
    %3 = tpu.matmul %1, %2, %cst {dimension_numbers = #tpu.dot_dimension_numbers<[1], [0], [0], [1], [0, 0, 1, 1], [], []>} : vector<16x32xbf16>, vector<32x32xbf16>, vector<16x32xf32> -> vector<16x32xf32>
    %c0_3 = arith.constant 0 : index
    %c0_4 = arith.constant 0 : index
    %4 = vector.load %arg3[%c0_3, %c0_4] : memref<1x32xf32, #tpu.memory_space<vmem>>, vector<1x32xf32>
    %5 = vector.broadcast %4 : vector<1x32xf32> to vector<16x32xf32>
    %6 = arith.addf %3, %5 : vector<16x32xf32>
    %c0_5 = arith.constant 0 : index
    %c0_6 = arith.constant 0 : index
    %7 = vector.load %arg4[%c0_5, %c0_6] : memref<16x32xf32, #tpu.memory_space<vmem>>, vector<16x32xf32>
    %8 = arith.addf %6, %7 : vector<16x32xf32>
    %cst_7 = arith.constant dense<0.000000e+00> : vector<16xf32>
    %9 = vector.multi_reduction <add>, %8, %cst_7 [1] : vector<16x32xf32> to vector<16xf32>
    %10 = vector.shape_cast %9 : vector<16xf32> to vector<16x1xf32>
    %cst_8 = arith.constant 3.200000e+01 : f32
    %11 = vector.broadcast %cst_8 : f32 to vector<16x1xf32>
    %12 = arith.divf %10, %11 : vector<16x1xf32>
    %13 = vector.broadcast %12 : vector<16x1xf32> to vector<16x32xf32>
    %14 = arith.subf %8, %13 : vector<16x32xf32>
    %15 = vector.broadcast %12 : vector<16x1xf32> to vector<16x32xf32>
    %16 = arith.subf %8, %15 : vector<16x32xf32>
    %17 = arith.mulf %14, %16 : vector<16x32xf32>
    %cst_9 = arith.constant dense<0.000000e+00> : vector<16xf32>
    %18 = vector.multi_reduction <add>, %17, %cst_9 [1] : vector<16x32xf32> to vector<16xf32>
    %19 = vector.shape_cast %18 : vector<16xf32> to vector<16x1xf32>
    %cst_10 = arith.constant 3.200000e+01 : f32
    %20 = vector.broadcast %cst_10 : f32 to vector<16x1xf32>
    %21 = arith.divf %19, %20 : vector<16x1xf32>
    %22 = vector.broadcast %12 : vector<16x1xf32> to vector<16x32xf32>
    %23 = arith.subf %8, %22 : vector<16x32xf32>
    %cst_11 = arith.constant 9.99999996E-13 : f32
    %24 = vector.broadcast %cst_11 : f32 to vector<16x1xf32>
    %25 = arith.addf %21, %24 : vector<16x1xf32>
    %26 = math.rsqrt %25 : vector<16x1xf32>
    %27 = vector.broadcast %26 : vector<16x1xf32> to vector<16x32xf32>
    %28 = arith.mulf %23, %27 : vector<16x32xf32>
    %c0_12 = arith.constant 0 : index
    %c0_13 = arith.constant 0 : index
    %29 = vector.load %arg5[%c0_12, %c0_13] : memref<1x32xf32, #tpu.memory_space<vmem>>, vector<1x32xf32>
    %30 = vector.broadcast %29 : vector<1x32xf32> to vector<16x32xf32>
    %31 = arith.mulf %28, %30 : vector<16x32xf32>
    %c0_14 = arith.constant 0 : index
    %c0_15 = arith.constant 0 : index
    %32 = vector.load %arg6[%c0_14, %c0_15] : memref<1x32xf32, #tpu.memory_space<vmem>>, vector<1x32xf32>
    %33 = vector.broadcast %32 : vector<1x32xf32> to vector<16x32xf32>
    %34 = arith.addf %31, %33 : vector<16x32xf32>
    %c0_16 = arith.constant 0 : index
    %c0_17 = arith.constant 0 : index
    %35 = vector.load %arg7[%c0_16, %c0_17] : memref<16x32xf32, #tpu.memory_space<vmem>>, vector<16x32xf32>
    tpu.vector_store %arg7[%c0_16, %c0_17], %34 {strides = array<i32>} : memref<16x32xf32, #tpu.memory_space<vmem>>, vector<16x32xf32>,
    return
  }
  func.func @transform_0(%arg0: i32) -> (i32, i32) {
    %c0_i32 = arith.constant 0 : i32
    %c0_i32_0 = arith.constant 0 : i32
    return %arg0, %c0_i32 : i32, i32
  }
  func.func @transform_1(%arg0: i32) -> (i32, i32) {
    %c0_i32 = arith.constant 0 : i32
    %c0_i32_0 = arith.constant 0 : i32
    %c0_i32_1 = arith.constant 0 : i32
    return %c0_i32, %c0_i32_0 : i32, i32
  }
  func.func @transform_2(%arg0: i32) -> (i32, i32) {
    %c0_i32 = arith.constant 0 : i32
    %c0_i32_0 = arith.constant 0 : i32
    %c0_i32_1 = arith.constant 0 : i32
    return %c0_i32, %c0_i32_0 : i32, i32
  }
  func.func @transform_3(%arg0: i32) -> (i32, i32) {
    %c0_i32 = arith.constant 0 : i32
    %c0_i32_0 = arith.constant 0 : i32
    return %arg0, %c0_i32 : i32, i32
  }
  func.func @transform_4(%arg0: i32) -> (i32, i32) {
    %c0_i32 = arith.constant 0 : i32
    %c0_i32_0 = arith.constant 0 : i32
    %c0_i32_1 = arith.constant 0 : i32
    return %c0_i32, %c0_i32_0 : i32, i32
  }
  func.func @transform_5(%arg0: i32) -> (i32, i32) {
    %c0_i32 = arith.constant 0 : i32
    %c0_i32_0 = arith.constant 0 : i32
    %c0_i32_1 = arith.constant 0 : i32
    return %c0_i32, %c0_i32_0 : i32, i32
  }
  func.func @transform_6(%arg0: i32) -> (i32, i32) {
    %c0_i32 = arith.constant 0 : i32
    %c0_i32_0 = arith.constant 0 : i32
    return %arg0, %c0_i32 : i32, i32
  }
}

module attributes {stable_mosaic.version = 11 : i64} {
  func.func @_dense_kernel(%arg0: i32, %arg1: memref<16x32xf32, #tpu.memory_space<vmem>>, %arg2: memref<32x64xbf16, #tpu.memory_space<vmem>>, %arg3: memref<1x64xf32, #tpu.memory_space<vmem>>, %arg4: memref<16x64xf32, #tpu.memory_space<vmem>>) attributes {dimension_semantics = [#tpu.dimension_semantics<parallel>], iteration_bounds = array<i64: 1>, scalar_prefetch = 0 : i64, scratch_operands = 0 : i64, tpu.core_type = #tpu.core_type<tc>, window_params = [{transform_indices = @transform_0, window_bounds = array<i64: 16, 32>}, {pipeline_mode = #tpu.pipeline_mode<synchronous>, transform_indices = @transform_1, window_bounds = array<i64: 32, 64>}, {pipeline_mode = #tpu.pipeline_mode<synchronous>, transform_indices = @transform_2, window_bounds = array<i64: 1, 64>}, {transform_indices = @transform_3, window_bounds = array<i64: 16, 64>}]} {
    %c0 = arith.constant 0 : index
    %c0_0 = arith.constant 0 : index
    %0 = vector.load %arg1[%c0, %c0_0] : memref<16x32xf32, #tpu.memory_space<vmem>>, vector<16x32xf32>
    %1 = arith.truncf %0 : vector<16x32xf32> to vector<16x32xbf16>
    %c0_1 = arith.constant 0 : index
    %c0_2 = arith.constant 0 : index
    %2 = vector.load %arg2[%c0_1, %c0_2] : memref<32x64xbf16, #tpu.memory_space<vmem>>, vector<32x64xbf16>
    %cst = arith.constant dense<0.000000e+00> : vector<16x64xf32>
    %3 = tpu.matmul %1, %2, %cst {dimension_numbers = #tpu.dot_dimension_numbers<[1], [0], [0], [1], [0, 0, 1, 1], [], []>} : vector<16x32xbf16>, vector<32x64xbf16>, vector<16x64xf32> -> vector<16x64xf32>
    %c0_3 = arith.constant 0 : index
    %c0_4 = arith.constant 0 : index
    %4 = vector.load %arg3[%c0_3, %c0_4] : memref<1x64xf32, #tpu.memory_space<vmem>>, vector<1x64xf32>
    %5 = vector.broadcast %4 : vector<1x64xf32> to vector<16x64xf32>
    %6 = arith.addf %3, %5 : vector<16x64xf32>
    %cst_5 = arith.constant 5.000000e-01 : f32
    %7 = vector.broadcast %cst_5 : f32 to vector<16x64xf32>
    %8 = arith.mulf %7, %6 : vector<16x64xf32>
    %cst_6 = arith.constant 0.707106769 : f32
    %9 = vector.broadcast %cst_6 : f32 to vector<16x64xf32>
    %10 = arith.mulf %6, %9 : vector<16x64xf32>
    %11 = math.erf %10 : vector<16x64xf32>
    %cst_7 = arith.constant 1.000000e+00 : f32
    %12 = vector.broadcast %cst_7 : f32 to vector<16x64xf32>
    %13 = arith.addf %12, %11 : vector<16x64xf32>
    %14 = arith.mulf %8, %13 : vector<16x64xf32>
    %c0_8 = arith.constant 0 : index
    %c0_9 = arith.constant 0 : index
    %15 = vector.load %arg4[%c0_8, %c0_9] : memref<16x64xf32, #tpu.memory_space<vmem>>, vector<16x64xf32>
    tpu.vector_store %arg4[%c0_8, %c0_9], %14 {strides = array<i32>} : memref<16x64xf32, #tpu.memory_space<vmem>>, vector<16x64xf32>,
    return
  }
  func.func @transform_0(%arg0: i32) -> (i32, i32) {
    %c0_i32 = arith.constant 0 : i32
    %c0_i32_0 = arith.constant 0 : i32
    return %arg0, %c0_i32 : i32, i32
  }
  func.func @transform_1(%arg0: i32) -> (i32, i32) {
    %c0_i32 = arith.constant 0 : i32
    %c0_i32_0 = arith.constant 0 : i32
    %c0_i32_1 = arith.constant 0 : i32
    return %c0_i32, %c0_i32_0 : i32, i32
  }
  func.func @transform_2(%arg0: i32) -> (i32, i32) {
    %c0_i32 = arith.constant 0 : i32
    %c0_i32_0 = arith.constant 0 : i32
    %c0_i32_1 = arith.constant 0 : i32
    return %c0_i32, %c0_i32_0 : i32, i32
  }
  func.func @transform_3(%arg0: i32) -> (i32, i32) {
    %c0_i32 = arith.constant 0 : i32
    %c0_i32_0 = arith.constant 0 : i32
    return %arg0, %c0_i32 : i32, i32
  }
}

module attributes {stable_mosaic.version = 11 : i64} {
  func.func @_dense_res_ln_kernel(%arg0: i32, %arg1: memref<16x64xf32, #tpu.memory_space<vmem>>, %arg2: memref<64x32xbf16, #tpu.memory_space<vmem>>, %arg3: memref<1x32xf32, #tpu.memory_space<vmem>>, %arg4: memref<16x32xf32, #tpu.memory_space<vmem>>, %arg5: memref<1x32xf32, #tpu.memory_space<vmem>>, %arg6: memref<1x32xf32, #tpu.memory_space<vmem>>, %arg7: memref<16x32xf32, #tpu.memory_space<vmem>>) attributes {dimension_semantics = [#tpu.dimension_semantics<parallel>], iteration_bounds = array<i64: 1>, scalar_prefetch = 0 : i64, scratch_operands = 0 : i64, tpu.core_type = #tpu.core_type<tc>, window_params = [{transform_indices = @transform_0, window_bounds = array<i64: 16, 64>}, {pipeline_mode = #tpu.pipeline_mode<synchronous>, transform_indices = @transform_1, window_bounds = array<i64: 64, 32>}, {pipeline_mode = #tpu.pipeline_mode<synchronous>, transform_indices = @transform_2, window_bounds = array<i64: 1, 32>}, {transform_indices = @transform_3, window_bounds = array<i64: 16, 32>}, {pipeline_mode = #tpu.pipeline_mode<synchronous>, transform_indices = @transform_4, window_bounds = array<i64: 1, 32>}, {pipeline_mode = #tpu.pipeline_mode<synchronous>, transform_indices = @transform_5, window_bounds = array<i64: 1, 32>}, {transform_indices = @transform_6, window_bounds = array<i64: 16, 32>}]} {
    %c0 = arith.constant 0 : index
    %c0_0 = arith.constant 0 : index
    %0 = vector.load %arg1[%c0, %c0_0] : memref<16x64xf32, #tpu.memory_space<vmem>>, vector<16x64xf32>
    %1 = arith.truncf %0 : vector<16x64xf32> to vector<16x64xbf16>
    %c0_1 = arith.constant 0 : index
    %c0_2 = arith.constant 0 : index
    %2 = vector.load %arg2[%c0_1, %c0_2] : memref<64x32xbf16, #tpu.memory_space<vmem>>, vector<64x32xbf16>
    %cst = arith.constant dense<0.000000e+00> : vector<16x32xf32>
    %3 = tpu.matmul %1, %2, %cst {dimension_numbers = #tpu.dot_dimension_numbers<[1], [0], [0], [1], [0, 0, 1, 1], [], []>} : vector<16x64xbf16>, vector<64x32xbf16>, vector<16x32xf32> -> vector<16x32xf32>
    %c0_3 = arith.constant 0 : index
    %c0_4 = arith.constant 0 : index
    %4 = vector.load %arg3[%c0_3, %c0_4] : memref<1x32xf32, #tpu.memory_space<vmem>>, vector<1x32xf32>
    %5 = vector.broadcast %4 : vector<1x32xf32> to vector<16x32xf32>
    %6 = arith.addf %3, %5 : vector<16x32xf32>
    %c0_5 = arith.constant 0 : index
    %c0_6 = arith.constant 0 : index
    %7 = vector.load %arg4[%c0_5, %c0_6] : memref<16x32xf32, #tpu.memory_space<vmem>>, vector<16x32xf32>
    %8 = arith.addf %6, %7 : vector<16x32xf32>
    %cst_7 = arith.constant dense<0.000000e+00> : vector<16xf32>
    %9 = vector.multi_reduction <add>, %8, %cst_7 [1] : vector<16x32xf32> to vector<16xf32>
    %10 = vector.shape_cast %9 : vector<16xf32> to vector<16x1xf32>
    %cst_8 = arith.constant 3.200000e+01 : f32
    %11 = vector.broadcast %cst_8 : f32 to vector<16x1xf32>
    %12 = arith.divf %10, %11 : vector<16x1xf32>
    %13 = vector.broadcast %12 : vector<16x1xf32> to vector<16x32xf32>
    %14 = arith.subf %8, %13 : vector<16x32xf32>
    %15 = vector.broadcast %12 : vector<16x1xf32> to vector<16x32xf32>
    %16 = arith.subf %8, %15 : vector<16x32xf32>
    %17 = arith.mulf %14, %16 : vector<16x32xf32>
    %cst_9 = arith.constant dense<0.000000e+00> : vector<16xf32>
    %18 = vector.multi_reduction <add>, %17, %cst_9 [1] : vector<16x32xf32> to vector<16xf32>
    %19 = vector.shape_cast %18 : vector<16xf32> to vector<16x1xf32>
    %cst_10 = arith.constant 3.200000e+01 : f32
    %20 = vector.broadcast %cst_10 : f32 to vector<16x1xf32>
    %21 = arith.divf %19, %20 : vector<16x1xf32>
    %22 = vector.broadcast %12 : vector<16x1xf32> to vector<16x32xf32>
    %23 = arith.subf %8, %22 : vector<16x32xf32>
    %cst_11 = arith.constant 9.99999996E-13 : f32
    %24 = vector.broadcast %cst_11 : f32 to vector<16x1xf32>
    %25 = arith.addf %21, %24 : vector<16x1xf32>
    %26 = math.rsqrt %25 : vector<16x1xf32>
    %27 = vector.broadcast %26 : vector<16x1xf32> to vector<16x32xf32>
    %28 = arith.mulf %23, %27 : vector<16x32xf32>
    %c0_12 = arith.constant 0 : index
    %c0_13 = arith.constant 0 : index
    %29 = vector.load %arg5[%c0_12, %c0_13] : memref<1x32xf32, #tpu.memory_space<vmem>>, vector<1x32xf32>
    %30 = vector.broadcast %29 : vector<1x32xf32> to vector<16x32xf32>
    %31 = arith.mulf %28, %30 : vector<16x32xf32>
    %c0_14 = arith.constant 0 : index
    %c0_15 = arith.constant 0 : index
    %32 = vector.load %arg6[%c0_14, %c0_15] : memref<1x32xf32, #tpu.memory_space<vmem>>, vector<1x32xf32>
    %33 = vector.broadcast %32 : vector<1x32xf32> to vector<16x32xf32>
    %34 = arith.addf %31, %33 : vector<16x32xf32>
    %c0_16 = arith.constant 0 : index
    %c0_17 = arith.constant 0 : index
    %35 = vector.load %arg7[%c0_16, %c0_17] : memref<16x32xf32, #tpu.memory_space<vmem>>, vector<16x32xf32>
    tpu.vector_store %arg7[%c0_16, %c0_17], %34 {strides = array<i32>} : memref<16x32xf32, #tpu.memory_space<vmem>>, vector<16x32xf32>,
    return
  }
  func.func @transform_0(%arg0: i32) -> (i32, i32) {
    %c0_i32 = arith.constant 0 : i32
    %c0_i32_0 = arith.constant 0 : i32
    return %arg0, %c0_i32 : i32, i32
  }
  func.func @transform_1(%arg0: i32) -> (i32, i32) {
    %c0_i32 = arith.constant 0 : i32
    %c0_i32_0 = arith.constant 0 : i32
    %c0_i32_1 = arith.constant 0 : i32
    return %c0_i32, %c0_i32_0 : i32, i32
  }
  func.func @transform_2(%arg0: i32) -> (i32, i32) {
    %c0_i32 = arith.constant 0 : i32
    %c0_i32_0 = arith.constant 0 : i32
    %c0_i32_1 = arith.constant 0 : i32
    return %c0_i32, %c0_i32_0 : i32, i32
  }
  func.func @transform_3(%arg0: i32) -> (i32, i32) {
    %c0_i32 = arith.constant 0 : i32
    %c0_i32_0 = arith.constant 0 : i32
    return %arg0, %c0_i32 : i32, i32
  }
  func.func @transform_4(%arg0: i32) -> (i32, i32) {
    %c0_i32 = arith.constant 0 : i32
    %c0_i32_0 = arith.constant 0 : i32
    %c0_i32_1 = arith.constant 0 : i32
    return %c0_i32, %c0_i32_0 : i32, i32
  }
  func.func @transform_5(%arg0: i32) -> (i32, i32) {
    %c0_i32 = arith.constant 0 : i32
    %c0_i32_0 = arith.constant 0 : i32
    %c0_i32_1 = arith.constant 0 : i32
    return %c0_i32, %c0_i32_0 : i32, i32
  }
  func.func @transform_6(%arg0: i32) -> (i32, i32) {
    %c0_i32 = arith.constant 0 : i32
    %c0_i32_0 = arith.constant 0 : i32
    return %arg0, %c0_i32 : i32, i32
  }
}

module attributes {stable_mosaic.version = 11 : i64} {
  func.func @_classifier_kernel(%arg0: memref<2x3x32xf32, #tpu.memory_space<vmem>>, %arg1: memref<2x3xf32, #tpu.memory_space<vmem>>, %arg2: memref<1x32xf32, #tpu.memory_space<vmem>>, %arg3: memref<1x1xf32, #tpu.memory_space<vmem>>, %arg4: memref<2x3xf32, #tpu.memory_space<vmem>>) attributes {dimension_semantics = [], scalar_prefetch = 0 : i64, scratch_operands = 0 : i64, tpu.core_type = #tpu.core_type<tc>} {
    %c0 = arith.constant 0 : index
    %c0_0 = arith.constant 0 : index
    %c0_1 = arith.constant 0 : index
    %0 = vector.load %arg0[%c0, %c0_0, %c0_1] : memref<2x3x32xf32, #tpu.memory_space<vmem>>, vector<2x3x32xf32>
    %c0_2 = arith.constant 0 : index
    %c0_3 = arith.constant 0 : index
    %1 = vector.load %arg1[%c0_2, %c0_3] : memref<2x3xf32, #tpu.memory_space<vmem>>, vector<2x3xf32>
    %c0_4 = arith.constant 0 : index
    %c0_5 = arith.constant 0 : index
    %2 = vector.load %arg2[%c0_4, %c0_5] : memref<1x32xf32, #tpu.memory_space<vmem>>, vector<1x32xf32>
    %3 = vector.shape_cast %1 : vector<2x3xf32> to vector<2x3x1xf32>
    %4 = vector.broadcast %3 : vector<2x3x1xf32> to vector<2x3x32xf32>
    %5 = arith.mulf %0, %4 : vector<2x3x32xf32>
    %6 = vector.shape_cast %2 : vector<1x32xf32> to vector<1x1x32xf32>
    %7 = vector.broadcast %6 : vector<1x1x32xf32> to vector<2x3x32xf32>
    %8 = arith.mulf %5, %7 : vector<2x3x32xf32>
    %cst = arith.constant dense<0.000000e+00> : vector<2x3xf32>
    %9 = vector.multi_reduction <add>, %8, %cst [2] : vector<2x3x32xf32> to vector<2x3xf32>
    %c0_6 = arith.constant 0 : index
    %c0_7 = arith.constant 0 : index
    %10 = vector.load %arg3[%c0_6, %c0_7] : memref<1x1xf32, #tpu.memory_space<vmem>>, vector<1x1xf32>
    %11 = vector.broadcast %10 : vector<1x1xf32> to vector<2x3xf32>
    %12 = arith.addf %9, %11 : vector<2x3xf32>
    %cst_8 = arith.constant 0.000000e+00 : f32
    %13 = vector.broadcast %cst_8 : f32 to vector<2x3xf32>
    %14 = arith.subf %13, %12 : vector<2x3xf32>
    %15 = math.exp %14 : vector<2x3xf32>
    %cst_9 = arith.constant 1.000000e+00 : f32
    %16 = vector.broadcast %cst_9 : f32 to vector<2x3xf32>
    %17 = arith.addf %16, %15 : vector<2x3xf32>
    %cst_10 = arith.constant 1.000000e+00 : f32
    %18 = vector.broadcast %cst_10 : f32 to vector<2x3xf32>
    %19 = arith.divf %18, %17 : vector<2x3xf32>
    %20 = arith.mulf %19, %1 : vector<2x3xf32>
    %c0_11 = arith.constant 0 : index
    %c0_12 = arith.constant 0 : index
    %21 = vector.load %arg4[%c0_11, %c0_12] : memref<2x3xf32, #tpu.memory_space<vmem>>, vector<2x3xf32>
    tpu.vector_store %arg4[%c0_11, %c0_12], %20 {strides = array<i32>} : memref<2x3xf32, #tpu.memory_space<vmem>>, vector<2x3xf32>,
    return
  }
}

</mosaic_0001>

<llo_original>
// kernel: summarizer_forward.13
$region0: #{summarizer_forward.13}
  #allocation0 [shape = 'u32[]', space=smem, size = 0x4, offset = 0x4, fixed_abs, tag = 'smem constant byte address 0x4 - core index']
  #allocation1 [shape = 'u32[144,128]{1,0:T(1,128)}', space=vmem, size = 0x12000, scoped, tag = 'internal scratch']
  %s0 = inlined_call_operand.vmem [shape: f32[16,32], index: 0, kind: input, shape index: {}]
  %s1 = inlined_call_operand.vmem [shape: bf16[32,96], index: 1, kind: input, shape index: {}]
  %s2 = inlined_call_operand.vmem [shape: f32[1,96], index: 2, kind: input, shape index: {}]
  %s3 = inlined_call_operand.vmem [shape: f32[16,96], index: 3, kind: output, shape index: {}]
  %s4 = sld [smem:[#allocation0]]
  $region22: #{summarizer_forward.13} parent=0
    _
  %s6 = ssub.s32 1, %s4
  %s7 = scalar_select 0, %s6, %s4
  // Predicated region
  $region2: #{summarizer_forward.13} parent=0 // pred_check
    _
  $region3: #{summarizer_forward.13} parent=0 // pred_check_branch
    %9 = sbr.rel (0) target = $region5
  $region4: #{summarizer_forward.13} parent=0 // pred_region
    _
  $region5: #{summarizer_forward.13} parent=0 // pred_fallthru
    _
  // Predicated region
  $region6: #{summarizer_forward.13} parent=0 // pred_check
    _
  $region7: #{summarizer_forward.13} parent=0 // pred_check_branch
    %11 = sbr.rel (0) target = $region9
  $region8: #{summarizer_forward.13} parent=0 // pred_region
    _
  $region9: #{summarizer_forward.13} parent=0 // pred_fallthru
    _
  // Predicated region
  $region10: #{summarizer_forward.13} parent=0 // pred_check
    _
  $region11: #{summarizer_forward.13} parent=0 // pred_check_branch
    %13 = sbr.rel (0) target = $region13
  $region12: #{summarizer_forward.13} parent=0 // pred_region
    _
  $region13: #{summarizer_forward.13} parent=0 // pred_fallthru
    _
  %v15 = vld [vmem:[%s0] sm:$0xff]
  %v16 = vld [vmem:[%s0 + $0x8] sm:$0xff]
  %v17 = vpack.c.bf16 %v16, %v15
  %v18 = vld [vmem:[%s1] sm:$0xf]
  %v19 = vld [vmem:[%s1 + $0x4] sm:$0xf]
  %v20 = vld [vmem:[%s1 + $0x8] sm:$0xf]
  %v21 = vld [vmem:[%s1 + $0xc] sm:$0xf]
  %v22 = vld [vmem:[%s2] sm:$0x1]
  %v24 = vlaneseq
  %v25 = vshrl.u32 %v24, 7
  %v26 = vsub.s32 0, %v25
  %v27 = vrot.slane %v22, %v26
  %v33 = vunpack.c.l.b16 %v18
  %v34 = vunpack.c.l.b16 %v19
  %v35 = vunpack.c.l.b16 %v20
  %v36 = vunpack.c.l.b16 %v21
  %v37 = vpack.c.b16 %v34, %v33
  %v38 = vpack.c.b16 %v36, %v35
  %vm41 = vcmask 261120
  %v43 = vsel %vm41, %v17, 0
  %45 = vmatprep.subr.bf16.mxu0 0
  %46 = vmatpush1.bf16.msra.mxu0 %v37
  %47 = vmatprep.subr.bf16.mxu0 0
  %48 = vmatpush1.bf16.msra.mxu0 %v38
  %49 = vmatprep.subr.bf16.mxu0 0
  %50 = vmatpush1.bf16.msra.mxu0 0
  %51 = vmatprep.subr.bf16.mxu0 0
  %52 = vmatpush1.bf16.msra.mxu0 0
  %53 = vmatprep.subr.bf16.mxu0 0
  %54 = vmatpush1.bf16.msra.mxu0 0
  %55 = vmatprep.subr.bf16.mxu0 0
  %56 = vmatpush1.bf16.msra.mxu0 0
  %57 = vmatprep.subr.bf16.mxu0 0
  %58 = vmatpush1.bf16.msra.mxu0 0
  %59 = vmatprep.subr.bf16.mxu0 0
  %60 = vmatpush1.bf16.msra.mxu0 0
  %61 = vmatprep.subr.bf16.mxu0 0
  %62 = vmatpush1.bf16.msra.mxu0 0
  %63 = vmatprep.subr.bf16.mxu0 0
  %64 = vmatpush1.bf16.msra.mxu0 0
  %65 = vmatprep.subr.bf16.mxu0 0
  %66 = vmatpush1.bf16.msra.mxu0 0
  %67 = vmatprep.subr.bf16.mxu0 0
  %68 = vmatpush1.bf16.msra.mxu0 0
  %69 = vmatprep.subr.bf16.mxu0 0
  %70 = vmatpush1.bf16.msra.mxu0 0
  %71 = vmatprep.subr.bf16.mxu0 0
  %72 = vmatpush1.bf16.msra.mxu0 0
  %73 = vmatprep.subr.bf16.mxu0 0
  %74 = vmatpush1.bf16.msra.mxu0 0
  %75 = vmatprep.subr.bf16.mxu0 0
  %76 = vmatpush1.bf16.msra.mxu0 0
  %77 = vmatprep.mubr.bf16.mxu0 0
  %78 = vmatmul.mubr.bf16.gmra.mrb[0].mxu0 %v43
  %v79 = vpop.f32.mrb[0].mxu0
  %v80 = vadd.f32 %v27, %v79
  %v81 = vpop.f32.mrb[0].mxu0
  %v82 = vpop.f32.mrb[0].mxu0
  %v83 = vadd.f32 %v27, %v82
  %v84 = vpop.f32.mrb[0].mxu0
  %85 = vdwg.mxu0
  %vm86 = vcmask 785408
  %87 = vst.msk [vmem:[%s3] sm:$0xff] %vm86, %v80
  %88 = vst.msk [vmem:[%s3 + $0x8] sm:$0xff] %vm86, %v83
  // Predicated region
  $region14: #{summarizer_forward.13} parent=0 // pred_check
    _
  $region15: #{summarizer_forward.13} parent=0 // pred_check_branch
    %90 = sbr.rel (0) target = $region17
  $region16: #{summarizer_forward.13} parent=0 // pred_region
    _
  $region17: #{summarizer_forward.13} parent=0 // pred_fallthru
    _
  // Predicated region
  $region18: #{summarizer_forward.13} parent=0 // pred_check
    _
  $region19: #{summarizer_forward.13} parent=0 // pred_check_branch
    %92 = sbr.rel (0) target = $region21
  $region20: #{summarizer_forward.13} parent=0 // pred_region
    _
  $region21: #{summarizer_forward.13} parent=0 // pred_fallthru
    _

// kernel: summarizer_forward.15
$region0: #{summarizer_forward.15}
  #allocation0 [shape = 'u32[]', space=smem, size = 0x4, offset = 0x4, fixed_abs, tag = 'smem constant byte address 0x4 - core index']
  #allocation1 [shape = 'u32[144,128]{1,0:T(1,128)}', space=vmem, size = 0x12000, scoped, tag = 'internal scratch']
  %s0 = inlined_call_operand.vmem [shape: f32[16,32], index: 0, kind: input, shape index: {}]
  %s1 = inlined_call_operand.vmem [shape: bf16[32,32], index: 1, kind: input, shape index: {}]
  %s2 = inlined_call_operand.vmem [shape: f32[1,32], index: 2, kind: input, shape index: {}]
  %s3 = inlined_call_operand.vmem [shape: f32[16,32], index: 3, kind: input, shape index: {}]
  %s4 = inlined_call_operand.vmem [shape: f32[1,32], index: 4, kind: input, shape index: {}]
  %s5 = inlined_call_operand.vmem [shape: f32[1,32], index: 5, kind: input, shape index: {}]
  %s6 = inlined_call_operand.vmem [shape: f32[16,32], index: 6, kind: output, shape index: {}]
  %s7 = sld [smem:[#allocation0]]
  $region34: #{summarizer_forward.15} parent=0
    _
  %s9 = ssub.s32 1, %s7
  %s10 = scalar_select 0, %s9, %s7
  // Predicated region
  $region2: #{summarizer_forward.15} parent=0 // pred_check
    _
  $region3: #{summarizer_forward.15} parent=0 // pred_check_branch
    %12 = sbr.rel (0) target = $region5
  $region4: #{summarizer_forward.15} parent=0 // pred_region
    _
  $region5: #{summarizer_forward.15} parent=0 // pred_fallthru
    _
  // Predicated region
  $region6: #{summarizer_forward.15} parent=0 // pred_check
    _
  $region7: #{summarizer_forward.15} parent=0 // pred_check_branch
    %14 = sbr.rel (0) target = $region9
  $region8: #{summarizer_forward.15} parent=0 // pred_region
    _
  $region9: #{summarizer_forward.15} parent=0 // pred_fallthru
    _
  // Predicated region
  $region10: #{summarizer_forward.15} parent=0 // pred_check
    _
  $region11: #{summarizer_forward.15} parent=0 // pred_check_branch
    %16 = sbr.rel (0) target = $region13
  $region12: #{summarizer_forward.15} parent=0 // pred_region
    _
  $region13: #{summarizer_forward.15} parent=0 // pred_fallthru
    _
  // Predicated region
  $region14: #{summarizer_forward.15} parent=0 // pred_check
    _
  $region15: #{summarizer_forward.15} parent=0 // pred_check_branch
    %18 = sbr.rel (0) target = $region17
  $region16: #{summarizer_forward.15} parent=0 // pred_region
    _
  $region17: #{summarizer_forward.15} parent=0 // pred_fallthru
    _
  // Predicated region
  $region18: #{summarizer_forward.15} parent=0 // pred_check
    _
  $region19: #{summarizer_forward.15} parent=0 // pred_check_branch
    %20 = sbr.rel (0) target = $region21
  $region20: #{summarizer_forward.15} parent=0 // pred_region
    _
  $region21: #{summarizer_forward.15} parent=0 // pred_fallthru
    _
  // Predicated region
  $region22: #{summarizer_forward.15} parent=0 // pred_check
    _
  $region23: #{summarizer_forward.15} parent=0 // pred_check_branch
    %22 = sbr.rel (0) target = $region25
  $region24: #{summarizer_forward.15} parent=0 // pred_region
    _
  $region25: #{summarizer_forward.15} parent=0 // pred_fallthru
    _
  %v24 = vld [vmem:[%s0] sm:$0xff]
  %v25 = vld [vmem:[%s0 + $0x8] sm:$0xff]
  %v26 = vpack.c.bf16 %v25, %v24
  %v27 = vld [vmem:[%s1] sm:$0xf]
  %v28 = vld [vmem:[%s1 + $0x4] sm:$0xf]
  %v29 = vld [vmem:[%s1 + $0x8] sm:$0xf]
  %v30 = vld [vmem:[%s1 + $0xc] sm:$0xf]
  %v31 = vld [vmem:[%s2] sm:$0x1]
  %v33 = vlaneseq
  %v34 = vshrl.u32 %v33, 7
  %v35 = vsub.s32 0, %v34
  %v36 = vrot.slane %v31, %v35
  %v42 = vunpack.c.l.b16 %v27
  %v43 = vunpack.c.l.b16 %v28
  %v44 = vunpack.c.l.b16 %v29
  %v45 = vunpack.c.l.b16 %v30
  %v46 = vpack.c.b16 %v43, %v42
  %v47 = vpack.c.b16 %v45, %v44
  %vm50 = vcmask 261120
  %v52 = vsel %vm50, %v26, 0
  %54 = vmatprep.subr.bf16.mxu0 0
  %55 = vmatpush1.bf16.msra.mxu0 %v46
  %56 = vmatprep.subr.bf16.mxu0 0
  %57 = vmatpush1.bf16.msra.mxu0 %v47
  %58 = vmatprep.subr.bf16.mxu0 0
  %59 = vmatpush1.bf16.msra.mxu0 0
  %60 = vmatprep.subr.bf16.mxu0 0
  %61 = vmatpush1.bf16.msra.mxu0 0
  %62 = vmatprep.subr.bf16.mxu0 0
  %63 = vmatpush1.bf16.msra.mxu0 0
  %64 = vmatprep.subr.bf16.mxu0 0
  %65 = vmatpush1.bf16.msra.mxu0 0
  %66 = vmatprep.subr.bf16.mxu0 0
  %67 = vmatpush1.bf16.msra.mxu0 0
  %68 = vmatprep.subr.bf16.mxu0 0
  %69 = vmatpush1.bf16.msra.mxu0 0
  %70 = vmatprep.subr.bf16.mxu0 0
  %71 = vmatpush1.bf16.msra.mxu0 0
  %72 = vmatprep.subr.bf16.mxu0 0
  %73 = vmatpush1.bf16.msra.mxu0 0
  %74 = vmatprep.subr.bf16.mxu0 0
  %75 = vmatpush1.bf16.msra.mxu0 0
  %76 = vmatprep.subr.bf16.mxu0 0
  %77 = vmatpush1.bf16.msra.mxu0 0
  %78 = vmatprep.subr.bf16.mxu0 0
  %79 = vmatpush1.bf16.msra.mxu0 0
  %80 = vmatprep.subr.bf16.mxu0 0
  %81 = vmatpush1.bf16.msra.mxu0 0
  %82 = vmatprep.subr.bf16.mxu0 0
  %83 = vmatpush1.bf16.msra.mxu0 0
  %84 = vmatprep.subr.bf16.mxu0 0
  %85 = vmatpush1.bf16.msra.mxu0 0
  %86 = vmatprep.mubr.bf16.mxu0 0
  %87 = vmatmul.mubr.bf16.gmra.mrb[0].mxu0 %v52
  %v88 = vpop.f32.mrb[0].mxu0
  %v89 = vadd.f32 %v36, %v88
  %v90 = vpop.f32.mrb[0].mxu0
  %v91 = vpop.f32.mrb[0].mxu0
  %v92 = vadd.f32 %v36, %v91
  %v93 = vpop.f32.mrb[0].mxu0
  %94 = vdwg.mxu0
  %v95 = vld [vmem:[%s3] sm:$0xff]
  %v96 = vld [vmem:[%s3 + $0x8] sm:$0xff]
  %v97 = vadd.f32 %v89, %v95
  %v98 = vadd.f32 %v92, %v96
  %v99 = vsel %vm50, %v97, 0.0
  %100 = vadd.xlane.f32.xlu0 %v99
  %v101 = vpop.xlane.xlu0 %100
  %v102 = vsel %vm50, %v98, 0.0
  %103 = vadd.xlane.f32.xlu0 %v102
  %v104 = vpop.xlane.xlu0 %103
  %v105 = vrcp.pop 32.0
  %v106 = vmul.f32 %v101, %v105
  %v107 = vmul.f32 %v104, %v105
  %v108 = vsub.f32 %v97, %v106
  %v109 = vsub.f32 %v98, %v107
  %v110 = vmul.f32 %v108, %v108
  %v111 = vmul.f32 %v109, %v109
  %v112 = vsel %vm50, %v110, 0.0
  %113 = vadd.xlane.f32.xlu0 %v112
  %v114 = vpop.xlane.xlu0 %113
  %v115 = vsel %vm50, %v111, 0.0
  %116 = vadd.xlane.f32.xlu0 %v115
  %v117 = vpop.xlane.xlu0 %116
  %v118 = vmul.f32 %v114, %v105
  %v119 = vmul.f32 %v117, %v105
  %v120 = vadd.f32 %v118, 1e-12
  %v121 = vadd.f32 %v119, 1e-12
  %v122 = vrsqrt.pop %v120
  %v123 = vrsqrt.pop %v121
  %v124 = vmul.f32 %v108, %v122
  %v125 = vmul.f32 %v109, %v123
  %v126 = vld [vmem:[%s4] sm:$0x1]
  %v128 = vlaneseq
  %v129 = vshrl.u32 %v128, 7
  %v130 = vsub.s32 0, %v129
  %v131 = vrot.slane %v126, %v130
  %v133 = vmul.f32 %v124, %v131
  %v134 = vmul.f32 %v125, %v131
  %v135 = vld [vmem:[%s5] sm:$0x1]
  %v137 = vlaneseq
  %v138 = vshrl.u32 %v137, 7
  %v139 = vsub.s32 0, %v138
  %v140 = vrot.slane %v135, %v139
  %v142 = vadd.f32 %v133, %v140
  %v143 = vadd.f32 %v134, %v140
  %144 = vst.msk [vmem:[%s6] sm:$0xff] %vm50, %v142
  %145 = vst.msk [vmem:[%s6 + $0x8] sm:$0xff] %vm50, %v143
  // Predicated region
  $region26: #{summarizer_forward.15} parent=0 // pred_check
    _
  $region27: #{summarizer_forward.15} parent=0 // pred_check_branch
    %147 = sbr.rel (0) target = $region29
  $region28: #{summarizer_forward.15} parent=0 // pred_region
    _
  $region29: #{summarizer_forward.15} parent=0 // pred_fallthru
    _
  // Predicated region
  $region30: #{summarizer_forward.15} parent=0 // pred_check
    _
  $region31: #{summarizer_forward.15} parent=0 // pred_check_branch
    %149 = sbr.rel (0) target = $region33
  $region32: #{summarizer_forward.15} parent=0 // pred_region
    _
  $region33: #{summarizer_forward.15} parent=0 // pred_fallthru
    _

// kernel: summarizer_forward.12
$region0: #{summarizer_forward.12}
  #allocation0 [shape = 'u32[]', space=smem, size = 0x4, offset = 0x4, fixed_abs, tag = 'smem constant byte address 0x4 - core index']
  #allocation1 [shape = 'u32[144,128]{1,0:T(1,128)}', space=vmem, size = 0x12000, scoped, tag = 'internal scratch']
  %s0 = inlined_call_operand.vmem [shape: f32[16,32], index: 0, kind: input, shape index: {}]
  %s1 = inlined_call_operand.vmem [shape: f32[1,32], index: 1, kind: input, shape index: {}]
  %s2 = inlined_call_operand.vmem [shape: f32[1,32], index: 2, kind: input, shape index: {}]
  %s3 = inlined_call_operand.vmem [shape: f32[16,32], index: 3, kind: output, shape index: {}]
  %s4 = sld [smem:[#allocation0]]
  $region22: #{summarizer_forward.12} parent=0
    _
  %s6 = ssub.s32 1, %s4
  %s7 = scalar_select 0, %s6, %s4
  // Predicated region
  $region2: #{summarizer_forward.12} parent=0 // pred_check
    _
  $region3: #{summarizer_forward.12} parent=0 // pred_check_branch
    %9 = sbr.rel (0) target = $region5
  $region4: #{summarizer_forward.12} parent=0 // pred_region
    _
  $region5: #{summarizer_forward.12} parent=0 // pred_fallthru
    _
  // Predicated region
  $region6: #{summarizer_forward.12} parent=0 // pred_check
    _
  $region7: #{summarizer_forward.12} parent=0 // pred_check_branch
    %11 = sbr.rel (0) target = $region9
  $region8: #{summarizer_forward.12} parent=0 // pred_region
    _
  $region9: #{summarizer_forward.12} parent=0 // pred_fallthru
    _
  // Predicated region
  $region10: #{summarizer_forward.12} parent=0 // pred_check
    _
  $region11: #{summarizer_forward.12} parent=0 // pred_check_branch
    %13 = sbr.rel (0) target = $region13
  $region12: #{summarizer_forward.12} parent=0 // pred_region
    _
  $region13: #{summarizer_forward.12} parent=0 // pred_fallthru
    _
  %v14 = vld [vmem:[%s0] sm:$0xff]
  %v15 = vld [vmem:[%s0 + $0x8] sm:$0xff]
  %vm16 = vcmask 261120
  %v17 = vsel %vm16, %v14, 0.0
  %18 = vadd.xlane.f32.xlu0 %v17
  %v19 = vpop.xlane.xlu0 %18
  %v20 = vsel %vm16, %v15, 0.0
  %21 = vadd.xlane.f32.xlu0 %v20
  %v22 = vpop.xlane.xlu0 %21
  %v23 = vrcp.pop 32.0
  %v24 = vmul.f32 %v19, %v23
  %v25 = vmul.f32 %v22, %v23
  %v26 = vsub.f32 %v14, %v24
  %v27 = vsub.f32 %v15, %v25
  %v28 = vmul.f32 %v26, %v26
  %v29 = vmul.f32 %v27, %v27
  %v30 = vsel %vm16, %v28, 0.0
  %31 = vadd.xlane.f32.xlu0 %v30
  %v32 = vpop.xlane.xlu0 %31
  %v33 = vsel %vm16, %v29, 0.0
  %34 = vadd.xlane.f32.xlu0 %v33
  %v35 = vpop.xlane.xlu0 %34
  %v36 = vmul.f32 %v32, %v23
  %v37 = vmul.f32 %v35, %v23
  %v38 = vadd.f32 %v36, 1e-12
  %v39 = vadd.f32 %v37, 1e-12
  %v40 = vrsqrt.pop %v38
  %v41 = vrsqrt.pop %v39
  %v42 = vmul.f32 %v26, %v40
  %v43 = vmul.f32 %v27, %v41
  %v44 = vld [vmem:[%s1] sm:$0x1]
  %v46 = vlaneseq
  %v47 = vshrl.u32 %v46, 7
  %v48 = vsub.s32 0, %v47
  %v49 = vrot.slane %v44, %v48
  %v51 = vmul.f32 %v42, %v49
  %v52 = vmul.f32 %v43, %v49
  %v53 = vld [vmem:[%s2] sm:$0x1]
  %v55 = vlaneseq
  %v56 = vshrl.u32 %v55, 7
  %v57 = vsub.s32 0, %v56
  %v58 = vrot.slane %v53, %v57
  %v60 = vadd.f32 %v51, %v58
  %v61 = vadd.f32 %v52, %v58
  %62 = vst.msk [vmem:[%s3] sm:$0xff] %vm16, %v60
  %63 = vst.msk [vmem:[%s3 + $0x8] sm:$0xff] %vm16, %v61
  // Predicated region
  $region14: #{summarizer_forward.12} parent=0 // pred_check
    _
  $region15: #{summarizer_forward.12} parent=0 // pred_check_branch
    %65 = sbr.rel (0) target = $region17
  $region16: #{summarizer_forward.12} parent=0 // pred_region
    _
  $region17: #{summarizer_forward.12} parent=0 // pred_fallthru
    _
  // Predicated region
  $region18: #{summarizer_forward.12} parent=0 // pred_check
    _
  $region19: #{summarizer_forward.12} parent=0 // pred_check_branch
    %67 = sbr.rel (0) target = $region21
  $region20: #{summarizer_forward.12} parent=0 // pred_region
    _
  $region21: #{summarizer_forward.12} parent=0 // pred_fallthru
    _

// kernel: summarizer_forward.14
$region0: #{summarizer_forward.14}
  #allocation0 [shape = 'u32[]', space=smem, size = 0x4, offset = 0x4, fixed_abs, tag = 'smem constant byte address 0x4 - core index']
  #allocation1 [shape = 'u32[144,128]{1,0:T(1,128)}', space=vmem, size = 0x12000, scoped, tag = 'internal scratch']
  %s0 = inlined_call_operand.vmem [shape: f32[2,8,96], index: 0, kind: input, shape index: {}]
  %s1 = inlined_call_operand.vmem [shape: f32[2,1,8], index: 1, kind: input, shape index: {}]
  %s2 = inlined_call_operand.vmem [shape: f32[2,8,32], index: 2, kind: output, shape index: {}]
  %s3 = sld [smem:[#allocation0]]
  $region41: #{summarizer_forward.14} parent=0
    _
  %s5 = ssub.s32 1, %s3
  %s6 = scalar_select 0, %s5, %s3
  loop: start=0, step=1, limit=4
  $region2: #{summarizer_forward.14} parent=0 // loop_pre_header
    _
  $region3: #{summarizer_forward.14} parent=0 // loop_header
    %s8 = sphi 0, %s12
    %p9 = scmp.ge.s32.totalorder %s8, 4
    %s18 = sphi 0, %s20
    %s21 = sphi 0, %s18
    %s22 = sphi 0, %s21
    %s38 = sphi 0, %s22
    %s44 = sphi 0, %s46
    %s47 = sphi 0, %s44
    %s48 = sphi 0, %s47
    %s64 = sphi 0, %s48
    %s70 = sphi 0, %s72
    %s73 = sphi 0, %s70
    %s74 = sphi 0, %s73
    %s90 = sphi 0, %s74
  $region4: #{summarizer_forward.14} parent=0 // loop_header_branch
    %11 = sbr.rel (%p9) target = $region8
  $region5: #{summarizer_forward.14} parent=0 // loop_body
    %s13 = ssub.s32 %s8, 1
    %s14 = ssub.s32 %s8, 2
    %s15 = sadd.s32 %s8, 1
    %s16 = ssub.s32 %s8, %s15
    %p17 = scmp.eq.s32.totalorder %s16, 0
    %s19 = sadd.s32 %s18, 1
    %s20 = scalar_select %p17, %s18, %s19
    %p23 = pneg %p17
    %p24 = scmp.eq.s32.totalorder %s8, 1
    %p25 = por %p23, %p24
    %p26 = scmp.ne.s32.totalorder %s18, %s21
    %p27 = scmp.eq.s32.totalorder %s8, 0
    %p28 = por %p26, %p27
    %p29 = scmp.ne.s32.totalorder %s18, %s21
    %p30 = scmp.eq.s32.totalorder %s13, 1
    %p31 = por %p29, %p30
    %p32 = scmp.ne.s32.totalorder %s21, %s22
    %p33 = scmp.eq.s32.totalorder %s13, 0
    %p34 = por %p32, %p33
    %p35 = scmp.ne.s32.totalorder %s21, %s22
    %p36 = scmp.eq.s32.totalorder %s14, 1
    %p37 = por %p35, %p36
    %p39 = scmp.ne.s32.totalorder %s22, %s38
    %p40 = scmp.eq.s32.totalorder %s14, 0
    %p41 = por %p39, %p40
    %s42 = ssub.s32 %s8, %s15
    %p43 = scmp.eq.s32.totalorder %s42, 0
    %s45 = sadd.s32 %s44, 1
    %s46 = scalar_select %p43, %s44, %s45
    %p49 = pneg %p43
    %p50 = scmp.eq.s32.totalorder %s8, 1
    %p51 = por %p49, %p50
    %p52 = scmp.ne.s32.totalorder %s44, %s47
    %p53 = scmp.eq.s32.totalorder %s8, 0
    %p54 = por %p52, %p53
    %p55 = scmp.ne.s32.totalorder %s44, %s47
    %p56 = scmp.eq.s32.totalorder %s13, 1
    %p57 = por %p55, %p56
    %p58 = scmp.ne.s32.totalorder %s47, %s48
    %p59 = scmp.eq.s32.totalorder %s13, 0
    %p60 = por %p58, %p59
    %p61 = scmp.ne.s32.totalorder %s47, %s48
    %p62 = scmp.eq.s32.totalorder %s14, 1
    %p63 = por %p61, %p62
    %p65 = scmp.ne.s32.totalorder %s48, %s64
    %p66 = scmp.eq.s32.totalorder %s14, 0
    %p67 = por %p65, %p66
    %s68 = ssub.s32 %s8, %s15
    %p69 = scmp.eq.s32.totalorder %s68, 0
    %s71 = sadd.s32 %s70, 1
    %s72 = scalar_select %p69, %s70, %s71
    %p75 = pneg %p69
    %p76 = scmp.eq.s32.totalorder %s8, 1
    %p77 = por %p75, %p76
    %p78 = scmp.ne.s32.totalorder %s70, %s73
    %p79 = scmp.eq.s32.totalorder %s8, 0
    %p80 = por %p78, %p79
    %p81 = scmp.ne.s32.totalorder %s70, %s73
    %p82 = scmp.eq.s32.totalorder %s13, 1
    %p83 = por %p81, %p82
    %p84 = scmp.ne.s32.totalorder %s73, %s74
    %p85 = scmp.eq.s32.totalorder %s13, 0
    %p86 = por %p84, %p85
    %p87 = scmp.ne.s32.totalorder %s73, %s74
    %p88 = scmp.eq.s32.totalorder %s14, 1
    %p89 = por %p87, %p88
    %p91 = scmp.ne.s32.totalorder %s74, %s90
    %p92 = scmp.eq.s32.totalorder %s14, 0
    %p93 = por %p91, %p92
    %p94 = scmp.le.s32.totalorder 1, %s8
    %p95 = scmp.lt.s32.totalorder %s8, 3
    %p96 = pnand %p94, %p95
    %p97 = pneg %p96
    // Predicated region
    $region9: #{summarizer_forward.14} parent=5 // pred_check
      _
    $region10: #{summarizer_forward.14} parent=5 // pred_check_branch
      %99 = sbr.rel (%p96) target = $region12
    $region11: #{summarizer_forward.14} parent=5 // pred_region
      %s100 = ssub.s32 %s8, 1
    $region12: #{summarizer_forward.14} parent=5 // pred_fallthru
      _
    %p101 = scmp.lt.s32.totalorder %s8, 2
    // Predicated region
    $region13: #{summarizer_forward.14} parent=5 // pred_check
      %p102 = pneg %p101
    $region14: #{summarizer_forward.14} parent=5 // pred_check_branch
      %104 = sbr.rel (%p102) target = $region16
    $region15: #{summarizer_forward.14} parent=5 // pred_region
      // Predicated region
      $region17: #{summarizer_forward.14} parent=15 // pred_check
        %p105 = pneg %p28
      $region18: #{summarizer_forward.14} parent=15 // pred_check_branch
        %107 = sbr.rel (%p105) target = $region20
      $region19: #{summarizer_forward.14} parent=15 // pred_region
        %p108 = scmp.lt.s32.totalorder %s8, 1
        %s109 = scalar_select %p108, %s8, 1
        %s110 = smul.addr %s109, 8
        %s111 = scalar_lea.vmem %s0, %s110
      $region20: #{summarizer_forward.14} parent=15 // pred_fallthru
        _
      // Predicated region
      $region21: #{summarizer_forward.14} parent=15 // pred_check
        %p112 = pneg %p54
      $region22: #{summarizer_forward.14} parent=15 // pred_check_branch
        %114 = sbr.rel (%p112) target = $region24
      $region23: #{summarizer_forward.14} parent=15 // pred_region
        %p115 = scmp.lt.s32.totalorder %s8, 1
        %s116 = scalar_select %p115, %s8, 1
        %s117 = scalar_lea.vmem %s1, %s116
      $region24: #{summarizer_forward.14} parent=15 // pred_fallthru
        _
    $region16: #{summarizer_forward.14} parent=5 // pred_fallthru
      _
    %p118 = scmp.le.s32.totalorder 1, %s8
    %p119 = scmp.lt.s32.totalorder %s8, 3
    %p120 = pnand %p118, %p119
    %p121 = pneg %p120
    // Predicated region
    $region25: #{summarizer_forward.14} parent=5 // pred_check
      _
    $region26: #{summarizer_forward.14} parent=5 // pred_check_branch
      %123 = sbr.rel (%p120) target = $region28
    $region27: #{summarizer_forward.14} parent=5 // pred_region
      %s124 = ssub.s32 %s8, 1
      %p125 = scmp.lt.s32.totalorder %s13, 1
      %s126 = scalar_select %p125, %s13, 1
      %s127 = smul.addr %s126, 8
      %s128 = scalar_lea.vmem %s0, %s127
      %p129 = pneg %p34
      %p130 = pneg %p31
      %p131 = scmp.lt.s32.totalorder %s13, 1
      %s132 = scalar_select %p131, %s13, 1
      %s133 = scalar_lea.vmem %s1, %s132
      %p134 = pneg %p60
      %p135 = pneg %p57
      %p136 = pneg %p86
      %p137 = pneg %p83
      %p138 = scmp.lt.s32.totalorder %s13, 1
      %s139 = scalar_select %p138, %s13, 1
      %s140 = smul.addr %s139, 8
      %s141 = scalar_lea.vmem %s2, %s140
      %p142 = scmp.lt.s32.totalorder %s13, 1
      %s143 = scalar_select %p142, %s13, 1
      %s144 = smul.addr %s143, 8
      %s145 = scalar_lea.vmem %s0, %s144
      %p146 = scmp.lt.s32.totalorder %s13, 1
      %s147 = scalar_select %p146, %s13, 1
      %s148 = scalar_lea.vmem %s1, %s147
      %p149 = scmp.lt.s32.totalorder %s13, 1
      %s150 = scalar_select %p149, %s13, 1
      %s151 = smul.addr %s150, 8
      %s152 = scalar_lea.vmem %s2, %s151
      %v154 = vld [vmem:[%s148] sm:$0x1]
      %v155 = vld [vmem:[%s145] sm:$0xff]
      %v156 = vpack.c.bf16 %v155, %v155
      %158 = vrot.lane.b32.xlu0 %v156, 96
      %v159 = vpop.permute.xlu0 %158
      %vm160 = vcmask 64512
      %v162 = vsel %vm160, %v156, 0
      %v165 = vsel %vm160, %v159, 0
      %167 = vmatprep.subr.bf16.mxu0 0
      %168 = vmatpush1.bf16.xpose.msra.mxu0 %v165
      %169 = vmatprep.subr.bf16.mxu0 0
      %170 = vmatpush1.bf16.xpose.msra.mxu0 0
      %171 = vmatprep.subr.bf16.mxu0 0
      %172 = vmatpush1.bf16.xpose.msra.mxu0 0
      %173 = vmatprep.subr.bf16.mxu0 0
      %174 = vmatpush1.bf16.xpose.msra.mxu0 0
      %175 = vmatprep.subr.bf16.mxu0 0
      %176 = vmatpush1.bf16.xpose.msra.mxu0 0
      %177 = vmatprep.subr.bf16.mxu0 0
      %178 = vmatpush1.bf16.xpose.msra.mxu0 0
      %179 = vmatprep.subr.bf16.mxu0 0
      %180 = vmatpush1.bf16.xpose.msra.mxu0 0
      %181 = vmatprep.subr.bf16.mxu0 0
      %182 = vmatpush1.bf16.xpose.msra.mxu0 0
      %183 = vmatprep.subr.bf16.mxu0 0
      %184 = vmatpush1.bf16.xpose.msra.mxu0 0
      %185 = vmatprep.subr.bf16.mxu0 0
      %186 = vmatpush1.bf16.xpose.msra.mxu0 0
      %187 = vmatprep.subr.bf16.mxu0 0
      %188 = vmatpush1.bf16.xpose.msra.mxu0 0
      %189 = vmatprep.subr.bf16.mxu0 0
      %190 = vmatpush1.bf16.xpose.msra.mxu0 0
      %191 = vmatprep.subr.bf16.mxu0 0
      %192 = vmatpush1.bf16.xpose.msra.mxu0 0
      %193 = vmatprep.subr.bf16.mxu0 0
      %194 = vmatpush1.bf16.xpose.msra.mxu0 0
      %195 = vmatprep.subr.bf16.mxu0 0
      %196 = vmatpush1.bf16.xpose.msra.mxu0 0
      %197 = vmatprep.subr.bf16.mxu0 0
      %198 = vmatpush1.bf16.xpose.msra.mxu0 0
      %199 = vmatprep.mubr.bf16.mxu0 0
      %200 = vmatmul.mubr.bf16.gmra.mrb[0].mxu0 %v162
      %v201 = vpop.f32.mrb[0].mxu0
      %v202 = vadd.f32 0.0, %v201
      %v203 = vpop.f32.mrb[0].mxu0
      %v204 = vpop.f32.mrb[0].mxu0
      %v205 = vpop.f32.mrb[0].mxu0
      %206 = vdwg.mxu0
      %v207 = vmul.f32 %v202, 0.35355338
      %v209 = vlaneseq
      %v210 = vshrl.u32 %v209, 7
      %v211 = vsub.s32 0, %v210
      %v212 = vrot.slane %v154, %v211
      %v214 = vadd.f32 %v207, %v212
      %v215 = vsel %vm160, %v214, -inf
      %216 = vmax.xlane.f32.xlu0 %v215
      %v217 = vpop.xlane.xlu0 %216
      %v218 = vsub.f32 %v214, %v217
      %v219 = vmul.f32 %v218, 1.442695
      %v220 = vpow.pop %v219
      %v221 = vsel %vm160, %v220, 0.0
      %222 = vadd.xlane.f32.xlu0 %v221
      %v223 = vpop.xlane.xlu0 %222
      %v224 = vrcp.pop %v223
      %v225 = vmul.f32 %v220, %v224
      %v226 = vpack.c.bf16 %v225, %v225
      %227 = vrot.lane.b32.xlu0 %v156, 64
      %v228 = vpop.permute.xlu0 %227
      %v230 = vsel %vm160, %v226, 0
      %vm232 = vcmask 1043456
      %v234 = vsel %vm232, %v228, 0
      %236 = vmatprep.subr.bf16.mxu0 0
      %237 = vmatpush1.bf16.msra.mxu0 %v234
      %238 = vmatprep.subr.bf16.mxu0 0
      %239 = vmatpush1.bf16.msra.mxu0 0
      %240 = vmatprep.subr.bf16.mxu0 0
      %241 = vmatpush1.bf16.msra.mxu0 0
      %242 = vmatprep.subr.bf16.mxu0 0
      %243 = vmatpush1.bf16.msra.mxu0 0
      %244 = vmatprep.subr.bf16.mxu0 0
      %245 = vmatpush1.bf16.msra.mxu0 0
      %246 = vmatprep.subr.bf16.mxu0 0
      %247 = vmatpush1.bf16.msra.mxu0 0
      %248 = vmatprep.subr.bf16.mxu0 0
      %249 = vmatpush1.bf16.msra.mxu0 0
      %250 = vmatprep.subr.bf16.mxu0 0
      %251 = vmatpush1.bf16.msra.mxu0 0
      %252 = vmatprep.subr.bf16.mxu0 0
      %253 = vmatpush1.bf16.msra.mxu0 0
      %254 = vmatprep.subr.bf16.mxu0 0
      %255 = vmatpush1.bf16.msra.mxu0 0
      %256 = vmatprep.subr.bf16.mxu0 0
      %257 = vmatpush1.bf16.msra.mxu0 0
      %258 = vmatprep.subr.bf16.mxu0 0
      %259 = vmatpush1.bf16.msra.mxu0 0
      %260 = vmatprep.subr.bf16.mxu0 0
      %261 = vmatpush1.bf16.msra.mxu0 0
      %262 = vmatprep.subr.bf16.mxu0 0
      %263 = vmatpush1.bf16.msra.mxu0 0
      %264 = vmatprep.subr.bf16.mxu0 0
      %265 = vmatpush1.bf16.msra.mxu0 0
      %266 = vmatprep.subr.bf16.mxu0 0
      %267 = vmatpush1.bf16.msra.mxu0 0
      %268 = vmatprep.mubr.bf16.mxu0 0
      %269 = vmatmul.mubr.bf16.gmra.mrb[0].mxu0 %v230
      %v270 = vpop.f32.mrb[0].mxu0
      %v271 = vadd.f32 0.0, %v270
      %v272 = vpop.f32.mrb[0].mxu0
      %v273 = vpop.f32.mrb[0].mxu0
      %v274 = vpop.f32.mrb[0].mxu0
      %275 = vdwg.mxu0
      %276 = vrot.lane.b32.xlu0 %v156, 120
      %v277 = vpop.permute.xlu0 %276
      %278 = vrot.lane.b32.xlu0 %v156, 88
      %v279 = vpop.permute.xlu0 %278
      %v281 = vsel %vm160, %v277, 0
      %v284 = vsel %vm160, %v279, 0
      %286 = vmatprep.subr.bf16.mxu0 0
      %287 = vmatpush1.bf16.xpose.msra.mxu0 %v284
      %288 = vmatprep.subr.bf16.mxu0 0
      %289 = vmatpush1.bf16.xpose.msra.mxu0 0
      %290 = vmatprep.subr.bf16.mxu0 0
      %291 = vmatpush1.bf16.xpose.msra.mxu0 0
      %292 = vmatprep.subr.bf16.mxu0 0
      %293 = vmatpush1.bf16.xpose.msra.mxu0 0
      %294 = vmatprep.subr.bf16.mxu0 0
      %295 = vmatpush1.bf16.xpose.msra.mxu0 0
      %296 = vmatprep.subr.bf16.mxu0 0
      %297 = vmatpush1.bf16.xpose.msra.mxu0 0
      %298 = vmatprep.subr.bf16.mxu0 0
      %299 = vmatpush1.bf16.xpose.msra.mxu0 0
      %300 = vmatprep.subr.bf16.mxu0 0
      %301 = vmatpush1.bf16.xpose.msra.mxu0 0
      %302 = vmatprep.subr.bf16.mxu0 0
      %303 = vmatpush1.bf16.xpose.msra.mxu0 0
      %304 = vmatprep.subr.bf16.mxu0 0
      %305 = vmatpush1.bf16.xpose.msra.mxu0 0
      %306 = vmatprep.subr.bf16.mxu0 0
      %307 = vmatpush1.bf16.xpose.msra.mxu0 0
      %308 = vmatprep.subr.bf16.mxu0 0
      %309 = vmatpush1.bf16.xpose.msra.mxu0 0
      %310 = vmatprep.subr.bf16.mxu0 0
      %311 = vmatpush1.bf16.xpose.msra.mxu0 0
      %312 = vmatprep.subr.bf16.mxu0 0
      %313 = vmatpush1.bf16.xpose.msra.mxu0 0
      %314 = vmatprep.subr.bf16.mxu0 0
      %315 = vmatpush1.bf16.xpose.msra.mxu0 0
      %316 = vmatprep.subr.bf16.mxu0 0
      %317 = vmatpush1.bf16.xpose.msra.mxu0 0
      %318 = vmatprep.mubr.bf16.mxu0 0
      %319 = vmatmul.mubr.bf16.gmra.mrb[0].mxu0 %v281
      %v320 = vpop.f32.mrb[0].mxu0
      %v321 = vadd.f32 0.0, %v320
      %v322 = vpop.f32.mrb[0].mxu0
      %v323 = vpop.f32.mrb[0].mxu0
      %v324 = vpop.f32.mrb[0].mxu0
      %325 = vdwg.mxu0
      %v326 = vmul.f32 %v321, 0.35355338
      %v327 = vadd.f32 %v326, %v212
      %v328 = vsel %vm160, %v327, -inf
      %329 = vmax.xlane.f32.xlu0 %v328
      %v330 = vpop.xlane.xlu0 %329
      %v331 = vsub.f32 %v327, %v330
      %v332 = vmul.f32 %v331, 1.442695
      %v333 = vpow.pop %v332
      %v334 = vsel %vm160, %v333, 0.0
      %335 = vadd.xlane.f32.xlu0 %v334
      %v336 = vpop.xlane.xlu0 %335
      %v337 = vrcp.pop %v336
      %v338 = vmul.f32 %v333, %v337
      %v339 = vpack.c.bf16 %v338, %v338
      %340 = vrot.lane.b32.xlu0 %v156, 56
      %v341 = vpop.permute.xlu0 %340
      %v343 = vsel %vm160, %v339, 0
      %v346 = vsel %vm232, %v341, 0
      %348 = vmatprep.subr.bf16.mxu0 0
      %349 = vmatpush1.bf16.msra.mxu0 %v346
      %350 = vmatprep.subr.bf16.mxu0 0
      %351 = vmatpush1.bf16.msra.mxu0 0
      %352 = vmatprep.subr.bf16.mxu0 0
      %353 = vmatpush1.bf16.msra.mxu0 0
      %354 = vmatprep.subr.bf16.mxu0 0
      %355 = vmatpush1.bf16.msra.mxu0 0
      %356 = vmatprep.subr.bf16.mxu0 0
      %357 = vmatpush1.bf16.msra.mxu0 0
      %358 = vmatprep.subr.bf16.mxu0 0
      %359 = vmatpush1.bf16.msra.mxu0 0
      %360 = vmatprep.subr.bf16.mxu0 0
      %361 = vmatpush1.bf16.msra.mxu0 0
      %362 = vmatprep.subr.bf16.mxu0 0
      %363 = vmatpush1.bf16.msra.mxu0 0
      %364 = vmatprep.subr.bf16.mxu0 0
      %365 = vmatpush1.bf16.msra.mxu0 0
      %366 = vmatprep.subr.bf16.mxu0 0
      %367 = vmatpush1.bf16.msra.mxu0 0
      %368 = vmatprep.subr.bf16.mxu0 0
      %369 = vmatpush1.bf16.msra.mxu0 0
      %370 = vmatprep.subr.bf16.mxu0 0
      %371 = vmatpush1.bf16.msra.mxu0 0
      %372 = vmatprep.subr.bf16.mxu0 0
      %373 = vmatpush1.bf16.msra.mxu0 0
      %374 = vmatprep.subr.bf16.mxu0 0
      %375 = vmatpush1.bf16.msra.mxu0 0
      %376 = vmatprep.subr.bf16.mxu0 0
      %377 = vmatpush1.bf16.msra.mxu0 0
      %378 = vmatprep.subr.bf16.mxu0 0
      %379 = vmatpush1.bf16.msra.mxu0 0
      %380 = vmatprep.mubr.bf16.mxu0 0
      %381 = vmatmul.mubr.bf16.gmra.mrb[0].mxu0 %v343
      %v382 = vpop.f32.mrb[0].mxu0
      %v383 = vadd.f32 0.0, %v382
      %v384 = vpop.f32.mrb[0].mxu0
      %v385 = vpop.f32.mrb[0].mxu0
      %v386 = vpop.f32.mrb[0].mxu0
      %387 = vdwg.mxu0
      %388 = vrot.lane.b32.xlu0 %v156, 112
      %v389 = vpop.permute.xlu0 %388
      %390 = vrot.lane.b32.xlu0 %v156, 80
      %v391 = vpop.permute.xlu0 %390
      %v393 = vsel %vm160, %v389, 0
      %v396 = vsel %vm160, %v391, 0
      %398 = vmatprep.subr.bf16.mxu0 0
      %399 = vmatpush1.bf16.xpose.msra.mxu0 %v396
      %400 = vmatprep.subr.bf16.mxu0 0
      %401 = vmatpush1.bf16.xpose.msra.mxu0 0
      %402 = vmatprep.subr.bf16.mxu0 0
      %403 = vmatpush1.bf16.xpose.msra.mxu0 0
      %404 = vmatprep.subr.bf16.mxu0 0
      %405 = vmatpush1.bf16.xpose.msra.mxu0 0
      %406 = vmatprep.subr.bf16.mxu0 0
      %407 = vmatpush1.bf16.xpose.msra.mxu0 0
      %408 = vmatprep.subr.bf16.mxu0 0
      %409 = vmatpush1.bf16.xpose.msra.mxu0 0
      %410 = vmatprep.subr.bf16.mxu0 0
      %411 = vmatpush1.bf16.xpose.msra.mxu0 0
      %412 = vmatprep.subr.bf16.mxu0 0
      %413 = vmatpush1.bf16.xpose.msra.mxu0 0
      %414 = vmatprep.subr.bf16.mxu0 0
      %415 = vmatpush1.bf16.xpose.msra.mxu0 0
      %416 = vmatprep.subr.bf16.mxu0 0
      %417 = vmatpush1.bf16.xpose.msra.mxu0 0
      %418 = vmatprep.subr.bf16.mxu0 0
      %419 = vmatpush1.bf16.xpose.msra.mxu0 0
      %420 = vmatprep.subr.bf16.mxu0 0
      %421 = vmatpush1.bf16.xpose.msra.mxu0 0
      %422 = vmatprep.subr.bf16.mxu0 0
      %423 = vmatpush1.bf16.xpose.msra.mxu0 0
      %424 = vmatprep.subr.bf16.mxu0 0
      %425 = vmatpush1.bf16.xpose.msra.mxu0 0
      %426 = vmatprep.subr.bf16.mxu0 0
      %427 = vmatpush1.bf16.xpose.msra.mxu0 0
      %428 = vmatprep.subr.bf16.mxu0 0
      %429 = vmatpush1.bf16.xpose.msra.mxu0 0
      %430 = vmatprep.mubr.bf16.mxu0 0
      %431 = vmatmul.mubr.bf16.gmra.mrb[0].mxu0 %v393
      %v432 = vpop.f32.mrb[0].mxu0
      %v433 = vadd.f32 0.0, %v432
      %v434 = vpop.f32.mrb[0].mxu0
      %v435 = vpop.f32.mrb[0].mxu0
      %v436 = vpop.f32.mrb[0].mxu0
      %437 = vdwg.mxu0
      %v438 = vmul.f32 %v433, 0.35355338
      %v439 = vadd.f32 %v438, %v212
      %v440 = vsel %vm160, %v439, -inf
      %441 = vmax.xlane.f32.xlu0 %v440
      %v442 = vpop.xlane.xlu0 %441
      %v443 = vsub.f32 %v439, %v442
      %v444 = vmul.f32 %v443, 1.442695
      %v445 = vpow.pop %v444
      %v446 = vsel %vm160, %v445, 0.0
      %447 = vadd.xlane.f32.xlu0 %v446
      %v448 = vpop.xlane.xlu0 %447
      %v449 = vrcp.pop %v448
      %v450 = vmul.f32 %v445, %v449
      %v451 = vpack.c.bf16 %v450, %v450
      %452 = vrot.lane.b32.xlu0 %v156, 48
      %v453 = vpop.permute.xlu0 %452
      %v455 = vsel %vm160, %v451, 0
      %v458 = vsel %vm232, %v453, 0
      %460 = vmatprep.subr.bf16.mxu0 0
      %461 = vmatpush1.bf16.msra.mxu0 %v458
      %462 = vmatprep.subr.bf16.mxu0 0
      %463 = vmatpush1.bf16.msra.mxu0 0
      %464 = vmatprep.subr.bf16.mxu0 0
      %465 = vmatpush1.bf16.msra.mxu0 0
      %466 = vmatprep.subr.bf16.mxu0 0
      %467 = vmatpush1.bf16.msra.mxu0 0
      %468 = vmatprep.subr.bf16.mxu0 0
      %469 = vmatpush1.bf16.msra.mxu0 0
      %470 = vmatprep.subr.bf16.mxu0 0
      %471 = vmatpush1.bf16.msra.mxu0 0
      %472 = vmatprep.subr.bf16.mxu0 0
      %473 = vmatpush1.bf16.msra.mxu0 0
      %474 = vmatprep.subr.bf16.mxu0 0
      %475 = vmatpush1.bf16.msra.mxu0 0
      %476 = vmatprep.subr.bf16.mxu0 0
      %477 = vmatpush1.bf16.msra.mxu0 0
      %478 = vmatprep.subr.bf16.mxu0 0
      %479 = vmatpush1.bf16.msra.mxu0 0
      %480 = vmatprep.subr.bf16.mxu0 0
      %481 = vmatpush1.bf16.msra.mxu0 0
      %482 = vmatprep.subr.bf16.mxu0 0
      %483 = vmatpush1.bf16.msra.mxu0 0
      %484 = vmatprep.subr.bf16.mxu0 0
      %485 = vmatpush1.bf16.msra.mxu0 0
      %486 = vmatprep.subr.bf16.mxu0 0
      %487 = vmatpush1.bf16.msra.mxu0 0
      %488 = vmatprep.subr.bf16.mxu0 0
      %489 = vmatpush1.bf16.msra.mxu0 0
      %490 = vmatprep.subr.bf16.mxu0 0
      %491 = vmatpush1.bf16.msra.mxu0 0
      %492 = vmatprep.mubr.bf16.mxu0 0
      %493 = vmatmul.mubr.bf16.gmra.mrb[0].mxu0 %v455
      %v494 = vpop.f32.mrb[0].mxu0
      %v495 = vadd.f32 0.0, %v494
      %v496 = vpop.f32.mrb[0].mxu0
      %v497 = vpop.f32.mrb[0].mxu0
      %v498 = vpop.f32.mrb[0].mxu0
      %499 = vdwg.mxu0
      %500 = vrot.lane.b32.xlu0 %v156, 104
      %v501 = vpop.permute.xlu0 %500
      %502 = vrot.lane.b32.xlu0 %v156, 72
      %v503 = vpop.permute.xlu0 %502
      %v505 = vsel %vm160, %v501, 0
      %v508 = vsel %vm160, %v503, 0
      %510 = vmatprep.subr.bf16.mxu0 0
      %511 = vmatpush1.bf16.xpose.msra.mxu0 %v508
      %512 = vmatprep.subr.bf16.mxu0 0
      %513 = vmatpush1.bf16.xpose.msra.mxu0 0
      %514 = vmatprep.subr.bf16.mxu0 0
      %515 = vmatpush1.bf16.xpose.msra.mxu0 0
      %516 = vmatprep.subr.bf16.mxu0 0
      %517 = vmatpush1.bf16.xpose.msra.mxu0 0
      %518 = vmatprep.subr.bf16.mxu0 0
      %519 = vmatpush1.bf16.xpose.msra.mxu0 0
      %520 = vmatprep.subr.bf16.mxu0 0
      %521 = vmatpush1.bf16.xpose.msra.mxu0 0
      %522 = vmatprep.subr.bf16.mxu0 0
      %523 = vmatpush1.bf16.xpose.msra.mxu0 0
      %524 = vmatprep.subr.bf16.mxu0 0
      %525 = vmatpush1.bf16.xpose.msra.mxu0 0
      %526 = vmatprep.subr.bf16.mxu0 0
      %527 = vmatpush1.bf16.xpose.msra.mxu0 0
      %528 = vmatprep.subr.bf16.mxu0 0
      %529 = vmatpush1.bf16.xpose.msra.mxu0 0
      %530 = vmatprep.subr.bf16.mxu0 0
      %531 = vmatpush1.bf16.xpose.msra.mxu0 0
      %532 = vmatprep.subr.bf16.mxu0 0
      %533 = vmatpush1.bf16.xpose.msra.mxu0 0
      %534 = vmatprep.subr.bf16.mxu0 0
      %535 = vmatpush1.bf16.xpose.msra.mxu0 0
      %536 = vmatprep.subr.bf16.mxu0 0
      %537 = vmatpush1.bf16.xpose.msra.mxu0 0
      %538 = vmatprep.subr.bf16.mxu0 0
      %539 = vmatpush1.bf16.xpose.msra.mxu0 0
      %540 = vmatprep.subr.bf16.mxu0 0
      %541 = vmatpush1.bf16.xpose.msra.mxu0 0
      %542 = vmatprep.mubr.bf16.mxu0 0
      %543 = vmatmul.mubr.bf16.gmra.mrb[0].mxu0 %v505
      %v544 = vpop.f32.mrb[0].mxu0
      %v545 = vadd.f32 0.0, %v544
      %v546 = vpop.f32.mrb[0].mxu0
      %v547 = vpop.f32.mrb[0].mxu0
      %v548 = vpop.f32.mrb[0].mxu0
      %549 = vdwg.mxu0
      %v550 = vmul.f32 %v545, 0.35355338
      %v551 = vadd.f32 %v550, %v212
      %v552 = vsel %vm160, %v551, -inf
      %553 = vmax.xlane.f32.xlu0 %v552
      %v554 = vpop.xlane.xlu0 %553
      %v555 = vsub.f32 %v551, %v554
      %v556 = vmul.f32 %v555, 1.442695
      %v557 = vpow.pop %v556
      %v558 = vsel %vm160, %v557, 0.0
      %559 = vadd.xlane.f32.xlu0 %v558
      %v560 = vpop.xlane.xlu0 %559
      %v561 = vrcp.pop %v560
      %v562 = vmul.f32 %v557, %v561
      %v563 = vpack.c.bf16 %v562, %v562
      %564 = vrot.lane.b32.xlu0 %v156, 40
      %v565 = vpop.permute.xlu0 %564
      %v567 = vsel %vm160, %v563, 0
      %v570 = vsel %vm232, %v565, 0
      %572 = vmatprep.subr.bf16.mxu0 0
      %573 = vmatpush1.bf16.msra.mxu0 %v570
      %574 = vmatprep.subr.bf16.mxu0 0
      %575 = vmatpush1.bf16.msra.mxu0 0
      %576 = vmatprep.subr.bf16.mxu0 0
      %577 = vmatpush1.bf16.msra.mxu0 0
      %578 = vmatprep.subr.bf16.mxu0 0
      %579 = vmatpush1.bf16.msra.mxu0 0
      %580 = vmatprep.subr.bf16.mxu0 0
      %581 = vmatpush1.bf16.msra.mxu0 0
      %582 = vmatprep.subr.bf16.mxu0 0
      %583 = vmatpush1.bf16.msra.mxu0 0
      %584 = vmatprep.subr.bf16.mxu0 0
      %585 = vmatpush1.bf16.msra.mxu0 0
      %586 = vmatprep.subr.bf16.mxu0 0
      %587 = vmatpush1.bf16.msra.mxu0 0
      %588 = vmatprep.subr.bf16.mxu0 0
      %589 = vmatpush1.bf16.msra.mxu0 0
      %590 = vmatprep.subr.bf16.mxu0 0
      %591 = vmatpush1.bf16.msra.mxu0 0
      %592 = vmatprep.subr.bf16.mxu0 0
      %593 = vmatpush1.bf16.msra.mxu0 0
      %594 = vmatprep.subr.bf16.mxu0 0
      %595 = vmatpush1.bf16.msra.mxu0 0
      %596 = vmatprep.subr.bf16.mxu0 0
      %597 = vmatpush1.bf16.msra.mxu0 0
      %598 = vmatprep.subr.bf16.mxu0 0
      %599 = vmatpush1.bf16.msra.mxu0 0
      %600 = vmatprep.subr.bf16.mxu0 0
      %601 = vmatpush1.bf16.msra.mxu0 0
      %602 = vmatprep.subr.bf16.mxu0 0
      %603 = vmatpush1.bf16.msra.mxu0 0
      %604 = vmatprep.mubr.bf16.mxu0 0
      %605 = vmatmul.mubr.bf16.gmra.mrb[0].mxu0 %v567
      %v606 = vpop.f32.mrb[0].mxu0
      %v607 = vadd.f32 0.0, %v606
      %v608 = vpop.f32.mrb[0].mxu0
      %v609 = vpop.f32.mrb[0].mxu0
      %v610 = vpop.f32.mrb[0].mxu0
      %611 = vdwg.mxu0
      %613 = vrot.lane.b32.xlu0 %v383, 8
      %v614 = vpop.permute.xlu0 %613
      %617 = vrot.lane.b32.xlu0 %v495, 16
      %v618 = vpop.permute.xlu0 %617
      %621 = vrot.lane.b32.xlu0 %v607, 24
      %v622 = vpop.permute.xlu0 %621
      %v624 = vsel %vm160, %v271, %v614
      %vm625 = vcmask 130048
      %v626 = vsel %vm625, %v624, %v618
      %vm627 = vcmask 195584
      %v628 = vsel %vm627, %v626, %v622
      %vm629 = vcmask 261120
      %630 = vst.msk [vmem:[%s152] sm:$0xff] %vm629, %v628
      %p631 = scmp.lt.s32.totalorder %s13, 1
      %s632 = scalar_select %p631, %s13, 1
      %s633 = smul.addr %s632, 8
      %s634 = scalar_lea.vmem %s2, %s633
      // Predicated region
      $region29: #{summarizer_forward.14} parent=27 // pred_check
        %p635 = pneg %p83
      $region30: #{summarizer_forward.14} parent=27 // pred_check_branch
        %637 = sbr.rel (%p635) target = $region32
      $region31: #{summarizer_forward.14} parent=27 // pred_region
        _
      $region32: #{summarizer_forward.14} parent=27 // pred_fallthru
        _
    $region28: #{summarizer_forward.14} parent=5 // pred_fallthru
      _
    %p638 = scmp.le.s32.totalorder 2, %s8
    // Predicated region
    $region33: #{summarizer_forward.14} parent=5 // pred_check
      %p639 = pneg %p638
    $region34: #{summarizer_forward.14} parent=5 // pred_check_branch
      %641 = sbr.rel (%p639) target = $region36
    $region35: #{summarizer_forward.14} parent=5 // pred_region
      %s642 = ssub.s32 %s8, 2
      // Predicated region
      $region37: #{summarizer_forward.14} parent=35 // pred_check
        %p643 = pneg %p89
      $region38: #{summarizer_forward.14} parent=35 // pred_check_branch
        %645 = sbr.rel (%p643) target = $region40
      $region39: #{summarizer_forward.14} parent=35 // pred_region
        %p646 = scmp.lt.s32.totalorder %s14, 1
        %s647 = scalar_select %p646, %s14, 1
        %s648 = smul.addr %s647, 8
        %s649 = scalar_lea.vmem %s2, %s648
      $region40: #{summarizer_forward.14} parent=35 // pred_fallthru
        _
    $region36: #{summarizer_forward.14} parent=5 // pred_fallthru
      _
  $region6: #{summarizer_forward.14} parent=0 // loop_footer
    %s12 = sadd.s32 1, %s8
  $region7: #{summarizer_forward.14} parent=0 // loop_footer_branch
    %7 = sbr.rel target = $region3
  $region8: #{summarizer_forward.14} parent=0 // loop_exit
    _

// kernel: summarizer_forward.16
$region0: #{summarizer_forward.16}
  #allocation0 [shape = 'u32[]', space=smem, size = 0x4, offset = 0x4, fixed_abs, tag = 'smem constant byte address 0x4 - core index']
  #allocation1 [shape = 'u32[144,128]{1,0:T(1,128)}', space=vmem, size = 0x12000, scoped, tag = 'internal scratch']
  %s0 = inlined_call_operand.vmem [shape: f32[16,32], index: 0, kind: input, shape index: {}]
  %s1 = inlined_call_operand.vmem [shape: bf16[32,64], index: 1, kind: input, shape index: {}]
  %s2 = inlined_call_operand.vmem [shape: f32[1,64], index: 2, kind: input, shape index: {}]
  %s3 = inlined_call_operand.vmem [shape: f32[16,64], index: 3, kind: output, shape index: {}]
  %s4 = sld [smem:[#allocation0]]
  $region22: #{summarizer_forward.16} parent=0
    _
  %s6 = ssub.s32 1, %s4
  %s7 = scalar_select 0, %s6, %s4
  // Predicated region
  $region2: #{summarizer_forward.16} parent=0 // pred_check
    _
  $region3: #{summarizer_forward.16} parent=0 // pred_check_branch
    %9 = sbr.rel (0) target = $region5
  $region4: #{summarizer_forward.16} parent=0 // pred_region
    _
  $region5: #{summarizer_forward.16} parent=0 // pred_fallthru
    _
  // Predicated region
  $region6: #{summarizer_forward.16} parent=0 // pred_check
    _
  $region7: #{summarizer_forward.16} parent=0 // pred_check_branch
    %11 = sbr.rel (0) target = $region9
  $region8: #{summarizer_forward.16} parent=0 // pred_region
    _
  $region9: #{summarizer_forward.16} parent=0 // pred_fallthru
    _
  // Predicated region
  $region10: #{summarizer_forward.16} parent=0 // pred_check
    _
  $region11: #{summarizer_forward.16} parent=0 // pred_check_branch
    %13 = sbr.rel (0) target = $region13
  $region12: #{summarizer_forward.16} parent=0 // pred_region
    _
  $region13: #{summarizer_forward.16} parent=0 // pred_fallthru
    _
  %v15 = vld [vmem:[%s0] sm:$0xff]
  %v16 = vld [vmem:[%s0 + $0x8] sm:$0xff]
  %v17 = vpack.c.bf16 %v16, %v15
  %v18 = vld [vmem:[%s1] sm:$0xf]
  %v19 = vld [vmem:[%s1 + $0x4] sm:$0xf]
  %v20 = vld [vmem:[%s1 + $0x8] sm:$0xf]
  %v21 = vld [vmem:[%s1 + $0xc] sm:$0xf]
  %v22 = vld [vmem:[%s2] sm:$0x1]
  %v24 = vlaneseq
  %v25 = vshrl.u32 %v24, 7
  %v26 = vsub.s32 0, %v25
  %v27 = vrot.slane %v22, %v26
  %v33 = vunpack.c.l.b16 %v18
  %v34 = vunpack.c.l.b16 %v19
  %v35 = vunpack.c.l.b16 %v20
  %v36 = vunpack.c.l.b16 %v21
  %v37 = vpack.c.b16 %v34, %v33
  %v38 = vpack.c.b16 %v36, %v35
  %vm41 = vcmask 261120
  %v43 = vsel %vm41, %v17, 0
  %45 = vmatprep.subr.bf16.mxu0 0
  %46 = vmatpush1.bf16.msra.mxu0 %v37
  %47 = vmatprep.subr.bf16.mxu0 0
  %48 = vmatpush1.bf16.msra.mxu0 %v38
  %49 = vmatprep.subr.bf16.mxu0 0
  %50 = vmatpush1.bf16.msra.mxu0 0
  %51 = vmatprep.subr.bf16.mxu0 0
  %52 = vmatpush1.bf16.msra.mxu0 0
  %53 = vmatprep.subr.bf16.mxu0 0
  %54 = vmatpush1.bf16.msra.mxu0 0
  %55 = vmatprep.subr.bf16.mxu0 0
  %56 = vmatpush1.bf16.msra.mxu0 0
  %57 = vmatprep.subr.bf16.mxu0 0
  %58 = vmatpush1.bf16.msra.mxu0 0
  %59 = vmatprep.subr.bf16.mxu0 0
  %60 = vmatpush1.bf16.msra.mxu0 0
  %61 = vmatprep.subr.bf16.mxu0 0
  %62 = vmatpush1.bf16.msra.mxu0 0
  %63 = vmatprep.subr.bf16.mxu0 0
  %64 = vmatpush1.bf16.msra.mxu0 0
  %65 = vmatprep.subr.bf16.mxu0 0
  %66 = vmatpush1.bf16.msra.mxu0 0
  %67 = vmatprep.subr.bf16.mxu0 0
  %68 = vmatpush1.bf16.msra.mxu0 0
  %69 = vmatprep.subr.bf16.mxu0 0
  %70 = vmatpush1.bf16.msra.mxu0 0
  %71 = vmatprep.subr.bf16.mxu0 0
  %72 = vmatpush1.bf16.msra.mxu0 0
  %73 = vmatprep.subr.bf16.mxu0 0
  %74 = vmatpush1.bf16.msra.mxu0 0
  %75 = vmatprep.subr.bf16.mxu0 0
  %76 = vmatpush1.bf16.msra.mxu0 0
  %77 = vmatprep.mubr.bf16.mxu0 0
  %78 = vmatmul.mubr.bf16.gmra.mrb[0].mxu0 %v43
  %v79 = vpop.f32.mrb[0].mxu0
  %v80 = vadd.f32 %v27, %v79
  %v81 = vpop.f32.mrb[0].mxu0
  %v82 = vpop.f32.mrb[0].mxu0
  %v83 = vadd.f32 %v27, %v82
  %v84 = vpop.f32.mrb[0].mxu0
  %85 = vdwg.mxu0
  %v86 = vmul.f32 %v80, 0.5
  %v87 = vmul.f32 %v83, 0.5
  %v88 = vmul.f32 %v80, 0.70710677
  %v89 = vmul.f32 %v83, 0.70710677
  %v90 = verf.f32.pop %v88
  %v91 = verf.f32.pop %v89
  %v92 = vadd.f32 %v90, 1.0
  %v93 = vadd.f32 %v91, 1.0
  %v94 = vmul.f32 %v86, %v92
  %v95 = vmul.f32 %v87, %v93
  %vm96 = vcmask 523264
  %97 = vst.msk [vmem:[%s3] sm:$0xff] %vm96, %v94
  %98 = vst.msk [vmem:[%s3 + $0x8] sm:$0xff] %vm96, %v95
  // Predicated region
  $region14: #{summarizer_forward.16} parent=0 // pred_check
    _
  $region15: #{summarizer_forward.16} parent=0 // pred_check_branch
    %100 = sbr.rel (0) target = $region17
  $region16: #{summarizer_forward.16} parent=0 // pred_region
    _
  $region17: #{summarizer_forward.16} parent=0 // pred_fallthru
    _
  // Predicated region
  $region18: #{summarizer_forward.16} parent=0 // pred_check
    _
  $region19: #{summarizer_forward.16} parent=0 // pred_check_branch
    %102 = sbr.rel (0) target = $region21
  $region20: #{summarizer_forward.16} parent=0 // pred_region
    _
  $region21: #{summarizer_forward.16} parent=0 // pred_fallthru
    _

// kernel: summarizer_forward.17
$region0: #{summarizer_forward.17}
  #allocation0 [shape = 'u32[]', space=smem, size = 0x4, offset = 0x4, fixed_abs, tag = 'smem constant byte address 0x4 - core index']
  #allocation1 [shape = 'u32[144,128]{1,0:T(1,128)}', space=vmem, size = 0x12000, scoped, tag = 'internal scratch']
  %s0 = inlined_call_operand.vmem [shape: f32[16,64], index: 0, kind: input, shape index: {}]
  %s1 = inlined_call_operand.vmem [shape: bf16[64,32], index: 1, kind: input, shape index: {}]
  %s2 = inlined_call_operand.vmem [shape: f32[1,32], index: 2, kind: input, shape index: {}]
  %s3 = inlined_call_operand.vmem [shape: f32[16,32], index: 3, kind: input, shape index: {}]
  %s4 = inlined_call_operand.vmem [shape: f32[1,32], index: 4, kind: input, shape index: {}]
  %s5 = inlined_call_operand.vmem [shape: f32[1,32], index: 5, kind: input, shape index: {}]
  %s6 = inlined_call_operand.vmem [shape: f32[16,32], index: 6, kind: output, shape index: {}]
  %s7 = sld [smem:[#allocation0]]
  $region34: #{summarizer_forward.17} parent=0
    _
  %s9 = ssub.s32 1, %s7
  %s10 = scalar_select 0, %s9, %s7
  // Predicated region
  $region2: #{summarizer_forward.17} parent=0 // pred_check
    _
  $region3: #{summarizer_forward.17} parent=0 // pred_check_branch
    %12 = sbr.rel (0) target = $region5
  $region4: #{summarizer_forward.17} parent=0 // pred_region
    _
  $region5: #{summarizer_forward.17} parent=0 // pred_fallthru
    _
  // Predicated region
  $region6: #{summarizer_forward.17} parent=0 // pred_check
    _
  $region7: #{summarizer_forward.17} parent=0 // pred_check_branch
    %14 = sbr.rel (0) target = $region9
  $region8: #{summarizer_forward.17} parent=0 // pred_region
    _
  $region9: #{summarizer_forward.17} parent=0 // pred_fallthru
    _
  // Predicated region
  $region10: #{summarizer_forward.17} parent=0 // pred_check
    _
  $region11: #{summarizer_forward.17} parent=0 // pred_check_branch
    %16 = sbr.rel (0) target = $region13
  $region12: #{summarizer_forward.17} parent=0 // pred_region
    _
  $region13: #{summarizer_forward.17} parent=0 // pred_fallthru
    _
  // Predicated region
  $region14: #{summarizer_forward.17} parent=0 // pred_check
    _
  $region15: #{summarizer_forward.17} parent=0 // pred_check_branch
    %18 = sbr.rel (0) target = $region17
  $region16: #{summarizer_forward.17} parent=0 // pred_region
    _
  $region17: #{summarizer_forward.17} parent=0 // pred_fallthru
    _
  // Predicated region
  $region18: #{summarizer_forward.17} parent=0 // pred_check
    _
  $region19: #{summarizer_forward.17} parent=0 // pred_check_branch
    %20 = sbr.rel (0) target = $region21
  $region20: #{summarizer_forward.17} parent=0 // pred_region
    _
  $region21: #{summarizer_forward.17} parent=0 // pred_fallthru
    _
  // Predicated region
  $region22: #{summarizer_forward.17} parent=0 // pred_check
    _
  $region23: #{summarizer_forward.17} parent=0 // pred_check_branch
    %22 = sbr.rel (0) target = $region25
  $region24: #{summarizer_forward.17} parent=0 // pred_region
    _
  $region25: #{summarizer_forward.17} parent=0 // pred_fallthru
    _
  %v24 = vld [vmem:[%s0] sm:$0xff]
  %v25 = vld [vmem:[%s0 + $0x8] sm:$0xff]
  %v26 = vpack.c.bf16 %v25, %v24
  %v27 = vld [vmem:[%s1] sm:$0xf]
  %v28 = vld [vmem:[%s1 + $0x4] sm:$0xf]
  %v29 = vld [vmem:[%s1 + $0x8] sm:$0xf]
  %v30 = vld [vmem:[%s1 + $0xc] sm:$0xf]
  %v31 = vld [vmem:[%s1 + $0x10] sm:$0xf]
  %v32 = vld [vmem:[%s1 + $0x14] sm:$0xf]
  %v33 = vld [vmem:[%s1 + $0x18] sm:$0xf]
  %v34 = vld [vmem:[%s1 + $0x1c] sm:$0xf]
  %v35 = vld [vmem:[%s2] sm:$0x1]
  %v37 = vlaneseq
  %v38 = vshrl.u32 %v37, 7
  %v39 = vsub.s32 0, %v38
  %v40 = vrot.slane %v35, %v39
  %v50 = vunpack.c.l.b16 %v27
  %v51 = vunpack.c.l.b16 %v28
  %v52 = vunpack.c.l.b16 %v29
  %v53 = vunpack.c.l.b16 %v30
  %v54 = vunpack.c.l.b16 %v31
  %v55 = vunpack.c.l.b16 %v32
  %v56 = vunpack.c.l.b16 %v33
  %v57 = vunpack.c.l.b16 %v34
  %v58 = vpack.c.b16 %v51, %v50
  %v59 = vpack.c.b16 %v53, %v52
  %v60 = vpack.c.b16 %v55, %v54
  %v61 = vpack.c.b16 %v57, %v56
  %vm66 = vcmask 523264
  %v68 = vsel %vm66, %v26, 0
  %70 = vmatprep.subr.bf16.mxu0 0
  %71 = vmatpush1.bf16.msra.mxu0 %v58
  %72 = vmatprep.subr.bf16.mxu0 0
  %73 = vmatpush1.bf16.msra.mxu0 %v59
  %74 = vmatprep.subr.bf16.mxu0 0
  %75 = vmatpush1.bf16.msra.mxu0 %v60
  %76 = vmatprep.subr.bf16.mxu0 0
  %77 = vmatpush1.bf16.msra.mxu0 %v61
  %78 = vmatprep.subr.bf16.mxu0 0
  %79 = vmatpush1.bf16.msra.mxu0 0
  %80 = vmatprep.subr.bf16.mxu0 0
  %81 = vmatpush1.bf16.msra.mxu0 0
  %82 = vmatprep.subr.bf16.mxu0 0
  %83 = vmatpush1.bf16.msra.mxu0 0
  %84 = vmatprep.subr.bf16.mxu0 0
  %85 = vmatpush1.bf16.msra.mxu0 0
  %86 = vmatprep.subr.bf16.mxu0 0
  %87 = vmatpush1.bf16.msra.mxu0 0
  %88 = vmatprep.subr.bf16.mxu0 0
  %89 = vmatpush1.bf16.msra.mxu0 0
  %90 = vmatprep.subr.bf16.mxu0 0
  %91 = vmatpush1.bf16.msra.mxu0 0
  %92 = vmatprep.subr.bf16.mxu0 0
  %93 = vmatpush1.bf16.msra.mxu0 0
  %94 = vmatprep.subr.bf16.mxu0 0
  %95 = vmatpush1.bf16.msra.mxu0 0
  %96 = vmatprep.subr.bf16.mxu0 0
  %97 = vmatpush1.bf16.msra.mxu0 0
  %98 = vmatprep.subr.bf16.mxu0 0
  %99 = vmatpush1.bf16.msra.mxu0 0
  %100 = vmatprep.subr.bf16.mxu0 0
  %101 = vmatpush1.bf16.msra.mxu0 0
  %102 = vmatprep.mubr.bf16.mxu0 0
  %103 = vmatmul.mubr.bf16.gmra.mrb[0].mxu0 %v68
  %v104 = vpop.f32.mrb[0].mxu0
  %v105 = vadd.f32 %v40, %v104
  %v106 = vpop.f32.mrb[0].mxu0
  %v107 = vpop.f32.mrb[0].mxu0
  %v108 = vadd.f32 %v40, %v107
  %v109 = vpop.f32.mrb[0].mxu0
  %110 = vdwg.mxu0
  %v111 = vld [vmem:[%s3] sm:$0xff]
  %v112 = vld [vmem:[%s3 + $0x8] sm:$0xff]
  %v113 = vadd.f32 %v105, %v111
  %v114 = vadd.f32 %v108, %v112
  %vm115 = vcmask 261120
  %v116 = vsel %vm115, %v113, 0.0
  %117 = vadd.xlane.f32.xlu0 %v116
  %v118 = vpop.xlane.xlu0 %117
  %v119 = vsel %vm115, %v114, 0.0
  %120 = vadd.xlane.f32.xlu0 %v119
  %v121 = vpop.xlane.xlu0 %120
  %v122 = vrcp.pop 32.0
  %v123 = vmul.f32 %v118, %v122
  %v124 = vmul.f32 %v121, %v122
  %v125 = vsub.f32 %v113, %v123
  %v126 = vsub.f32 %v114, %v124
  %v127 = vmul.f32 %v125, %v125
  %v128 = vmul.f32 %v126, %v126
  %v129 = vsel %vm115, %v127, 0.0
  %130 = vadd.xlane.f32.xlu0 %v129
  %v131 = vpop.xlane.xlu0 %130
  %v132 = vsel %vm115, %v128, 0.0
  %133 = vadd.xlane.f32.xlu0 %v132
  %v134 = vpop.xlane.xlu0 %133
  %v135 = vmul.f32 %v131, %v122
  %v136 = vmul.f32 %v134, %v122
  %v137 = vadd.f32 %v135, 1e-12
  %v138 = vadd.f32 %v136, 1e-12
  %v139 = vrsqrt.pop %v137
  %v140 = vrsqrt.pop %v138
  %v141 = vmul.f32 %v125, %v139
  %v142 = vmul.f32 %v126, %v140
  %v143 = vld [vmem:[%s4] sm:$0x1]
  %v145 = vlaneseq
  %v146 = vshrl.u32 %v145, 7
  %v147 = vsub.s32 0, %v146
  %v148 = vrot.slane %v143, %v147
  %v150 = vmul.f32 %v141, %v148
  %v151 = vmul.f32 %v142, %v148
  %v152 = vld [vmem:[%s5] sm:$0x1]
  %v154 = vlaneseq
  %v155 = vshrl.u32 %v154, 7
  %v156 = vsub.s32 0, %v155
  %v157 = vrot.slane %v152, %v156
  %v159 = vadd.f32 %v150, %v157
  %v160 = vadd.f32 %v151, %v157
  %161 = vst.msk [vmem:[%s6] sm:$0xff] %vm115, %v159
  %162 = vst.msk [vmem:[%s6 + $0x8] sm:$0xff] %vm115, %v160
  // Predicated region
  $region26: #{summarizer_forward.17} parent=0 // pred_check
    _
  $region27: #{summarizer_forward.17} parent=0 // pred_check_branch
    %164 = sbr.rel (0) target = $region29
  $region28: #{summarizer_forward.17} parent=0 // pred_region
    _
  $region29: #{summarizer_forward.17} parent=0 // pred_fallthru
    _
  // Predicated region
  $region30: #{summarizer_forward.17} parent=0 // pred_check
    _
  $region31: #{summarizer_forward.17} parent=0 // pred_check_branch
    %166 = sbr.rel (0) target = $region33
  $region32: #{summarizer_forward.17} parent=0 // pred_region
    _
  $region33: #{summarizer_forward.17} parent=0 // pred_fallthru
    _

// kernel: summarizer_forward.23
$region0: #{summarizer_forward.23}
  #allocation0 [shape = 'u32[]', space=smem, size = 0x4, offset = 0x4, fixed_abs, tag = 'smem constant byte address 0x4 - core index']
  #allocation1 [shape = 'u32[144,128]{1,0:T(1,128)}', space=vmem, size = 0x12000, scoped, tag = 'internal scratch']
  #allocation2 [shape = 'f32[1,1]{1,0:T(1,128)S(1)}', space=vmem, size = 0x200, scoped, tag = 'scoped memory for summarizer_forward.23']
  %s0 = inlined_call_operand.vmem [shape: f32[2,3,32], index: 0, kind: input, shape index: {}]
  %s1 = inlined_call_operand.vmem [shape: f32[2,3], index: 1, kind: input, shape index: {}]
  %s2 = inlined_call_operand.vmem [shape: f32[1,32], index: 2, kind: input, shape index: {}]
  %s3 = inlined_call_operand.<no memory space> [shape: f32[1,1], index: 3, kind: input, shape index: {}]
  %s4 = inlined_call_operand.hbm [shape: f32[2,3], index: 4, kind: output, shape index: {}]
  %s5 = sld [smem:[#allocation0]]
  $region26: #{summarizer_forward.23} parent=0
    _
  %s7 = ssub.s32 1, %s5
  %s8 = scalar_select 0, %s7, %s5
  %v9 = vstv %s3
  %10 = vst [vmem:[#allocation2] sm:$0x1] %v9
  $region1: #{summarizer_forward.23} parent=0
    #allocation3 [shape = 'u8[1024]{0}', space=vmem, size = 0x400, scoped, tag = 'output window, operand 0, single buffered']
    #allocation4 [shape = 's32[1]{0}', space=sflag, size = 0x4, scoped, tag = 'scoped memory for summarizer_forward.23']
    %11 = vsyncpa [#allocation4], 0
    // Predicated region
    $region2: #{summarizer_forward.23} parent=1 // pred_check
      _
    $region3: #{summarizer_forward.23} parent=1 // pred_check_branch
      %13 = sbr.rel (0) target = $region5
    $region4: #{summarizer_forward.23} parent=1 // pred_region
      _
    $region5: #{summarizer_forward.23} parent=1 // pred_fallthru
      _
    // Predicated region
    $region6: #{summarizer_forward.23} parent=1 // pred_check
      _
    $region7: #{summarizer_forward.23} parent=1 // pred_check_branch
      %15 = sbr.rel (0) target = $region9
    $region8: #{summarizer_forward.23} parent=1 // pred_region
      _
    $region9: #{summarizer_forward.23} parent=1 // pred_fallthru
      _
    // Predicated region
    $region10: #{summarizer_forward.23} parent=1 // pred_check
      _
    $region11: #{summarizer_forward.23} parent=1 // pred_check_branch
      %17 = sbr.rel (0) target = $region13
    $region12: #{summarizer_forward.23} parent=1 // pred_region
      _
    $region13: #{summarizer_forward.23} parent=1 // pred_fallthru
      _
    // Predicated region
    $region14: #{summarizer_forward.23} parent=1 // pred_check
      _
    $region15: #{summarizer_forward.23} parent=1 // pred_check_branch
      %19 = sbr.rel (0) target = $region17
    $region16: #{summarizer_forward.23} parent=1 // pred_region
      _
    $region17: #{summarizer_forward.23} parent=1 // pred_fallthru
      _
    %v20 = vld [vmem:[%s0] sm:$0x7]
    %v21 = vld [vmem:[%s0 + $0x4] sm:$0x7]
    %v22 = vld [vmem:[%s1] sm:$0x3]
    %v23 = vld [vmem:[%s2] sm:$0x1]
    %v24 = vlaneseq
    %v25 = vshrl.u32 %v24, 7
    %v26 = vsub.s32 0, %v25
    %v27 = vrot.slane %v22, %v26
    %29 = vbcast.lane.b32.xlu0 %v27, 256
    %v30 = vpop.permute.xlu0 %29
    %v31 = vlaneseq
    %v32 = vshrl.u32 %v31, 7
    %v33 = vsub.s32 1, %v32
    %v34 = vrot.slane %v22, %v33
    %36 = vbcast.lane.b32.xlu0 %v34, 256
    %v37 = vpop.permute.xlu0 %36
    %v38 = vmul.f32 %v20, %v30
    %v39 = vmul.f32 %v21, %v37
    %v41 = vlaneseq
    %v42 = vshrl.u32 %v41, 7
    %v43 = vsub.s32 0, %v42
    %v44 = vrot.slane %v23, %v43
    %v46 = vmul.f32 %v38, %v44
    %v47 = vmul.f32 %v39, %v44
    %vm48 = vcmask 256000
    %v49 = vsel %vm48, %v46, 0.0
    %50 = vadd.xlane.f32.xlu0 %v49
    %v51 = vpop.xlane.xlu0 %50
    %v52 = vsel %vm48, %v47, 0.0
    %53 = vadd.xlane.f32.xlu0 %v52
    %v54 = vpop.xlane.xlu0 %53
    %v55 = vld [vmem:[#allocation2] sm:$0x1]
    %v57 = vlaneseq
    %v58 = vshrl.u32 %v57, 7
    %v59 = vsub.s32 0, %v58
    %v60 = vrot.slane %v55, %v59
    %61 = vset.pattern.permute.xlu0 0
    %62 = vperm.xlu0 %61, %v60
    %v63 = vpop.permute.xlu0 %62
    %v65 = vadd.f32 %v51, %v63
    %v66 = vadd.f32 %v54, %v63
    %v67 = vsub.f32 0.0, %v65
    %v68 = vsub.f32 0.0, %v66
    %v69 = vmul.f32 %v67, 1.442695
    %v70 = vpow.pop %v69
    %v71 = vmul.f32 %v68, 1.442695
    %v72 = vpow.pop %v71
    %v73 = vadd.f32 %v70, 1.0
    %v74 = vadd.f32 %v72, 1.0
    %v75 = vrcp.pop %v73
    %v76 = vmul.f32 1.0, %v75
    %v77 = vrcp.pop %v74
    %v78 = vmul.f32 1.0, %v77
    %v80 = vlaneseq
    %v81 = vshrl.u32 %v80, 7
    %v82 = vsub.s32 0, %v81
    %v83 = vrot.slane %v22, %v82
    %85 = vbcast.lane.b32.xlu0 %v83, 256
    %v86 = vpop.permute.xlu0 %85
    %v87 = vlaneseq
    %v88 = vshrl.u32 %v87, 7
    %v89 = vsub.s32 1, %v88
    %v90 = vrot.slane %v22, %v89
    %92 = vbcast.lane.b32.xlu0 %v90, 256
    %v93 = vpop.permute.xlu0 %92
    %v96 = vmul.f32 %v76, %v86
    %v97 = vmul.f32 %v78, %v93
    %100 = vset.pattern.permute.xlu0 0
    %101 = vperm.xlu0 %100, %v96
    %v102 = vpop.permute.xlu0 %101
    %103 = vset.pattern.permute.xlu0 0
    %104 = vperm.xlu0 %103, %v97
    %v105 = vpop.permute.xlu0 %104
    %v106 = vlaneseq
    %v107 = vand.u32 %v106, 127
    %v108 = vlaneseq
    %v109 = vshrl.u32 %v108, 7
    %v110 = vsub.s32 %v107, %v109
    %v111 = vrot.slane %v102, %v110
    %v112 = vlaneseq
    %v113 = vshrl.u32 %v112, 7
    %v114 = vsub.s32 %v107, %v113
    %v115 = vrot.slane %v105, %v114
    %vm116 = vcmask 1041409
    %v117 = vsel %vm116, %v115, %v111
    %vm119 = vcmask 17408
    %120 = vst.msk [vmem:[#allocation3] sm:$0x3] %vm119, %v117
    // Predicated region
    $region18: #{summarizer_forward.23} parent=1 // pred_check
      _
    $region19: #{summarizer_forward.23} parent=1 // pred_check_branch
      %122 = sbr.rel (0) target = $region21
    $region20: #{summarizer_forward.23} parent=1 // pred_region
      %s124 = ssub.s32 32, 32
      %125 = vsyncadd [#allocation4], %s124
      %s127 = sshll.u32 [#allocation3], 4
      %s128 = int_to_ptr.vmem [resolvable:$true] %s127
      %130 = dma.vmem_to_hbm [thread:$0]  %s128, 32, %s4, [#allocation4]
    $region21: #{summarizer_forward.23} parent=1 // pred_fallthru
      _
    // Predicated region
    $region22: #{summarizer_forward.23} parent=1 // pred_check
      _
    $region23: #{summarizer_forward.23} parent=1 // pred_check_branch
      %132 = sbr.rel (0) target = $region25
    $region24: #{summarizer_forward.23} parent=1 // pred_region
      %133 = dma.done [#allocation4], 32
    $region25: #{summarizer_forward.23} parent=1 // pred_fallthru
      _
    %134 = vsyncpa [#allocation4], 1

</llo_original>
